<compile_context>
chip_gen: v7x
topology: tpu7x:2x2x1
jax: 0.10.0
libtpu: 0.0.40
codegen_flags: <defaults>
</compile_context>

<pallas_src>
import jax
import jax.numpy as jnp
from jax.experimental import pallas as pl
from jax.experimental.pallas import tpu as pltpu


# ---------------------------------------------------------------------------
# Kernel A: fused input projection  gates = X2d @ Wcat + bcat  -> (3, rows, H)
# ---------------------------------------------------------------------------
def _proj_kernel(x_ref, w_ref, b_ref, o_ref):
    H = o_ref.shape[2]
    g = jnp.dot(x_ref[...], w_ref[...], preferred_element_type=jnp.float32) + b_ref[...]
    o_ref[0] = g[:, 0 * H:1 * H]   # xi
    o_ref[1] = g[:, 1 * H:2 * H]   # xc  (bU_c folded into bias)
    o_ref[2] = g[:, 2 * H:3 * H]   # xo  (bU_o folded into bias)


# ---------------------------------------------------------------------------
# Kernel B: chunked sequential LSTM recurrence
# ---------------------------------------------------------------------------
def _lstm_rec_kernel(g_ref, u_ref, bf_ref, h_out_ref, c_out_ref, h_sc, c_sc):
    TB, TC, H = h_out_ref.shape

    @pl.when(pl.program_id(1) == 0)
    def _():
        h_sc[...] = jnp.zeros_like(h_sc)
        c_sc[...] = jnp.zeros_like(c_sc)

    u = u_ref[...]                                   # (H, 4H), VMEM-resident across steps
    bf = jnp.broadcast_to(bf_ref[...], (TB, H))      # hoisted broadcast of bU_f

    def step(s, carry):
        h_prev, c_prev = carry
        xi = g_ref[0, :, pl.ds(s, 1), :].reshape(TB, H)
        xc = g_ref[1, :, pl.ds(s, 1), :].reshape(TB, H)
        xo = g_ref[2, :, pl.ds(s, 1), :].reshape(TB, H)

        # One fused recurrent matmul instead of four.
        rec = jnp.dot(h_prev, u, preferred_element_type=jnp.float32)   # (TB, 4H)

        i = jax.nn.sigmoid(xi + rec[:, 0 * H:1 * H])                    # U_i has no bias
        f = jax.nn.sigmoid(xi + rec[:, 1 * H:2 * H] + bf)               # uses xi (reference bug)
        c = f * c_prev + i * jnp.tanh(xc + rec[:, 2 * H:3 * H])
        o = jax.nn.sigmoid(xo + rec[:, 3 * H:4 * H])
        h = o * jnp.tanh(c)

        h_out_ref[:, pl.ds(s, 1), :] = h[:, None, :]
        c_out_ref[:, pl.ds(s, 1), :] = c[:, None, :]
        return h, c

    h, c = jax.lax.fori_loop(0, TC, step, (h_sc[...], c_sc[...]), unroll=True)
    h_sc[...] = h
    c_sc[...] = c


# ---------------------------------------------------------------------------
# Wrapper
# ---------------------------------------------------------------------------
def lstm_forward(X, params):
    B, T, D = X.shape
    H = params["U_i"].shape[0]
    R = B * T

    # --- Kernel A: fused input projection (W_f/b_f dropped; bU_c/bU_o folded) ----
    Wcat = jnp.concatenate(
        [params["W_i"].T, params["W_c"].T, params["W_o"].T], axis=1)            # (D, 3H)
    bcat = jnp.concatenate(
        [params["b_i"],
         params["b_c"] + params["bU_c"],
         params["b_o"] + params["bU_o"]])[None, :]                              # (1, 3H)

    RT = R if R <= 512 else 512    # row tile (>=512 rows ~ HBM roofline for big inputs)
    gates = pl.pallas_call(
        _proj_kernel,
        grid=(pl.cdiv(R, RT),),
        in_specs=[pl.BlockSpec((RT, D), lambda i: (i, 0)),
                  pl.BlockSpec((D, 3 * H), lambda i: (0, 0)),
                  pl.BlockSpec((1, 3 * H), lambda i: (0, 0))],
        out_specs=pl.BlockSpec((3, RT, H), lambda i: (0, i, 0)),
        out_shape=jax.ShapeDtypeStruct((3, R, H), jnp.float32),
        compiler_params=pltpu.CompilerParams(dimension_semantics=("parallel",)),
    )(X.reshape(R, D).astype(jnp.float32), Wcat, bcat)

    gates = gates.reshape(3, B, T, H)   # metadata-only reshape, no HBM round trip

    # --- Kernel B: chunked sequential recurrence ---------------------------------
    Ucat = jnp.concatenate(
        [params["U_i"].T, params["U_f"].T, params["U_c"].T, params["U_o"].T],
        axis=1)                                                                 # (H, 4H)
    bUf = params["bU_f"][None, :]                                               # (1, H)

    TC = next((c for c in (32, 16, 8) if T % c == 0), T)   # timesteps per grid step
    TB = 8 if B % 8 == 0 else B                            # batch rows per grid step

    gate_spec = pl.BlockSpec((3, TB, TC, H), lambda b, c: (0, b, c, 0))
    out_spec = pl.BlockSpec((TB, TC, H), lambda b, c: (b, c, 0))

    h_hist, c_hist = pl.pallas_call(
        _lstm_rec_kernel,
        grid=(B // TB, T // TC),
        in_specs=[gate_spec,
                  pl.BlockSpec((H, 4 * H), lambda b, c: (0, 0)),
                  pl.BlockSpec((1, H), lambda b, c: (0, 0))],
        out_specs=[out_spec, out_spec],
        out_shape=[jax.ShapeDtypeStruct((B, T, H), jnp.float32),
                   jax.ShapeDtypeStruct((B, T, H), jnp.float32)],
        scratch_shapes=[pltpu.VMEM((TB, H), jnp.float32),
                        pltpu.VMEM((TB, H), jnp.float32)],
        compiler_params=pltpu.CompilerParams(
            dimension_semantics=("parallel", "arbitrary")),
    )(gates, Ucat, bUf)

    # Already (B, T, H) batch-major, matching torch.stack(h_hist, dim=1).
    return h_hist, c_hist


# ---------------------------------------------------------------------------
# Pure-JAX reference (for correctness check)
# ---------------------------------------------------------------------------
def lstm_reference(X, params):
    B, T, D = X.shape
    H = params["U_i"].shape[0]
    Xi = X @ params["W_i"].T + params["b_i"]
    Xc = X @ params["W_c"].T + params["b_c"]
    Xo = X @ params["W_o"].T + params["b_o"]
    h = jnp.zeros((B, H), jnp.float32)
    c = jnp.zeros((B, H), jnp.float32)
    hs, cs = [], []
    for t in range(T):
        xi, xc, xo = Xi[:, t], Xc[:, t], Xo[:, t]
        i = jax.nn.sigmoid(xi + h @ params["U_i"].T)
        f = jax.nn.sigmoid(xi + h @ params["U_f"].T + params["bU_f"])
        c = f * c + i * jnp.tanh(xc + h @ params["U_c"].T + params["bU_c"])
        o = jax.nn.sigmoid(xo + h @ params["U_o"].T + params["bU_o"])
        h = o * jnp.tanh(c)
        hs.append(h)
        cs.append(c)
    return jnp.stack(hs, axis=1), jnp.stack(cs, axis=1)


# ---------------------------------------------------------------------------
# Deterministic parameter init (shapes from the module's __init__)
# ---------------------------------------------------------------------------
def init_params(key, in_dim, out_dim):
    ks = jax.random.split(key, 12)

    def xavier(k, shape):  # torch layout (out, in)
        bound = (6.0 / (shape[0] + shape[1])) ** 0.5
        return jax.random.uniform(k, shape, jnp.float32, -bound, bound)

    def orthogonal(k, n):
        a = jax.random.normal(k, (n, n), jnp.float32)
        q, r = jnp.linalg.qr(a)
        return q * jnp.sign(jnp.diag(r))[None, :]

    def linear_bias(k, fan_in, n):
        bound = 1.0 / (fan_in ** 0.5)
        return jax.random.uniform(k, (n,), jnp.float32, -bound, bound)

    return {
        "W_i": xavier(ks[0], (out_dim, in_dim)),
        "b_i": jnp.zeros((out_dim,), jnp.float32),
        "W_f": xavier(ks[1], (out_dim, in_dim)),   # unused in forward (reference bug)
        "b_f": jnp.ones((out_dim,), jnp.float32),  # unused in forward (reference bug)
        "W_c": xavier(ks[2], (out_dim, in_dim)),
        "b_c": jnp.zeros((out_dim,), jnp.float32),
        "W_o": xavier(ks[3], (out_dim, in_dim)),
        "b_o": jnp.zeros((out_dim,), jnp.float32),
        "U_i": orthogonal(ks[4], out_dim),
        "U_f": orthogonal(ks[5], out_dim),
        "bU_f": linear_bias(ks[6], out_dim, out_dim),
        "U_c": orthogonal(ks[7], out_dim),
        "bU_c": linear_bias(ks[8], out_dim, out_dim),
        "U_o": orthogonal(ks[9], out_dim),
        "bU_o": linear_bias(ks[10], out_dim, out_dim),
    }


if __name__ == "__main__":
    B, T, IN_DIM, OUT_DIM = 2, 8, 32, 32
    key = jax.random.PRNGKey(0)
    kx, kp = jax.random.split(key)
    X = jax.random.normal(kx, (B, T, IN_DIM), jnp.float32)
    params = init_params(kp, IN_DIM, OUT_DIM)

    h_hist, c_hist = jax.jit(lstm_forward)(X, params)
    jax.block_until_ready((h_hist, c_hist))

    h_ref, c_ref = lstm_reference(X, params)
    assert h_hist.shape == (B, T, OUT_DIM) and c_hist.shape == (B, T, OUT_DIM)
    assert jnp.allclose(h_hist, h_ref, atol=1e-3, rtol=1e-3)
    assert jnp.allclose(c_hist, c_ref, atol=1e-3, rtol=1e-3)

    print("KERNEL_OK")
</pallas_src>

<mosaic_0001>
module attributes {stable_mosaic.version = 11 : i64} {
  func.func @_proj_kernel(%arg0: i32, %arg1: memref<16x32xf32, #tpu.memory_space<vmem>>, %arg2: memref<32x96xf32, #tpu.memory_space<vmem>>, %arg3: memref<1x96xf32, #tpu.memory_space<vmem>>, %arg4: memref<3x16x32xf32, #tpu.memory_space<vmem>>) attributes {dimension_semantics = [#tpu.dimension_semantics<parallel>], iteration_bounds = array<i64: 1>, scalar_prefetch = 0 : i64, scratch_operands = 0 : i64, tpu.core_type = #tpu.core_type<tc>, window_params = [{transform_indices = @transform_0, window_bounds = array<i64: 16, 32>}, {pipeline_mode = #tpu.pipeline_mode<synchronous>, transform_indices = @transform_1, window_bounds = array<i64: 32, 96>}, {pipeline_mode = #tpu.pipeline_mode<synchronous>, transform_indices = @transform_2, window_bounds = array<i64: 1, 96>}, {transform_indices = @transform_3, window_bounds = array<i64: 3, 16, 32>}]} {
    %c0 = arith.constant 0 : index
    %c0_0 = arith.constant 0 : index
    %0 = vector.load %arg1[%c0, %c0_0] : memref<16x32xf32, #tpu.memory_space<vmem>>, vector<16x32xf32>
    %c0_1 = arith.constant 0 : index
    %c0_2 = arith.constant 0 : index
    %1 = vector.load %arg2[%c0_1, %c0_2] : memref<32x96xf32, #tpu.memory_space<vmem>>, vector<32x96xf32>
    %cst = arith.constant dense<0.000000e+00> : vector<16x96xf32>
    %2 = tpu.matmul %0, %1, %cst {dimension_numbers = #tpu.dot_dimension_numbers<[1], [0], [0], [1], [0, 0, 1, 1], [], []>} : vector<16x32xf32>, vector<32x96xf32>, vector<16x96xf32> -> vector<16x96xf32>
    %c0_3 = arith.constant 0 : index
    %c0_4 = arith.constant 0 : index
    %3 = vector.load %arg3[%c0_3, %c0_4] : memref<1x96xf32, #tpu.memory_space<vmem>>, vector<1x96xf32>
    %4 = vector.broadcast %3 : vector<1x96xf32> to vector<16x96xf32>
    %5 = arith.addf %2, %4 : vector<16x96xf32>
    %6 = vector.extract_strided_slice %5 {offsets = [0, 0], sizes = [16, 32], strides = [1, 1]} : vector<16x96xf32> to vector<16x32xf32>
    %c0_5 = arith.constant 0 : index
    %c0_6 = arith.constant 0 : index
    %c0_7 = arith.constant 0 : index
    %7 = vector.load %arg4[%c0_5, %c0_6, %c0_7] : memref<3x16x32xf32, #tpu.memory_space<vmem>>, vector<1x16x32xf32>
    %8 = vector.shape_cast %7 : vector<1x16x32xf32> to vector<16x32xf32>
    %9 = vector.shape_cast %6 : vector<16x32xf32> to vector<1x16x32xf32>
    tpu.vector_store %arg4[%c0_5, %c0_6, %c0_7], %9 {strides = array<i32>} : memref<3x16x32xf32, #tpu.memory_space<vmem>>, vector<1x16x32xf32>,
    %10 = vector.extract_strided_slice %5 {offsets = [0, 32], sizes = [16, 32], strides = [1, 1]} : vector<16x96xf32> to vector<16x32xf32>
    %c1 = arith.constant 1 : index
    %c0_8 = arith.constant 0 : index
    %c0_9 = arith.constant 0 : index
    %11 = vector.load %arg4[%c1, %c0_8, %c0_9] : memref<3x16x32xf32, #tpu.memory_space<vmem>>, vector<1x16x32xf32>
    %12 = vector.shape_cast %11 : vector<1x16x32xf32> to vector<16x32xf32>
    %13 = vector.shape_cast %10 : vector<16x32xf32> to vector<1x16x32xf32>
    tpu.vector_store %arg4[%c1, %c0_8, %c0_9], %13 {strides = array<i32>} : memref<3x16x32xf32, #tpu.memory_space<vmem>>, vector<1x16x32xf32>,
    %14 = vector.extract_strided_slice %5 {offsets = [0, 64], sizes = [16, 32], strides = [1, 1]} : vector<16x96xf32> to vector<16x32xf32>
    %c2 = arith.constant 2 : index
    %c0_10 = arith.constant 0 : index
    %c0_11 = arith.constant 0 : index
    %15 = vector.load %arg4[%c2, %c0_10, %c0_11] : memref<3x16x32xf32, #tpu.memory_space<vmem>>, vector<1x16x32xf32>
    %16 = vector.shape_cast %15 : vector<1x16x32xf32> to vector<16x32xf32>
    %17 = vector.shape_cast %14 : vector<16x32xf32> to vector<1x16x32xf32>
    tpu.vector_store %arg4[%c2, %c0_10, %c0_11], %17 {strides = array<i32>} : memref<3x16x32xf32, #tpu.memory_space<vmem>>, vector<1x16x32xf32>,
    return
  }
  func.func @transform_0(%arg0: i32) -> (i32, i32) {
    %c0_i32 = arith.constant 0 : i32
    %c0_i32_0 = arith.constant 0 : i32
    return %arg0, %c0_i32 : i32, i32
  }
  func.func @transform_1(%arg0: i32) -> (i32, i32) {
    %c0_i32 = arith.constant 0 : i32
    %c0_i32_0 = arith.constant 0 : i32
    %c0_i32_1 = arith.constant 0 : i32
    return %c0_i32, %c0_i32_0 : i32, i32
  }
  func.func @transform_2(%arg0: i32) -> (i32, i32) {
    %c0_i32 = arith.constant 0 : i32
    %c0_i32_0 = arith.constant 0 : i32
    %c0_i32_1 = arith.constant 0 : i32
    return %c0_i32, %c0_i32_0 : i32, i32
  }
  func.func @transform_3(%arg0: i32) -> (i32, i32, i32) {
    %c0_i32 = arith.constant 0 : i32
    %c0_i32_0 = arith.constant 0 : i32
    %c0_i32_1 = arith.constant 0 : i32
    return %c0_i32, %arg0, %c0_i32_0 : i32, i32, i32
  }
}

module attributes {stable_mosaic.version = 11 : i64} {
  func.func @_lstm_rec_kernel(%arg0: i32, %arg1: i32, %arg2: memref<3x2x8x32xf32, #tpu.memory_space<vmem>>, %arg3: memref<32x128xf32, #tpu.memory_space<vmem>>, %arg4: memref<1x32xf32, #tpu.memory_space<vmem>>, %arg5: memref<2x8x32xf32, #tpu.memory_space<vmem>>, %arg6: memref<2x8x32xf32, #tpu.memory_space<vmem>>, %arg7: memref<2x32xf32, #tpu.memory_space<vmem>>, %arg8: memref<2x32xf32, #tpu.memory_space<vmem>>) attributes {dimension_semantics = [#tpu.dimension_semantics<parallel>, #tpu.dimension_semantics<arbitrary>], iteration_bounds = array<i64: 1, 1>, scalar_prefetch = 0 : i64, scratch_operands = 2 : i64, tpu.core_type = #tpu.core_type<tc>, window_params = [{transform_indices = @transform_0, window_bounds = array<i64: 3, 2, 8, 32>}, {pipeline_mode = #tpu.pipeline_mode<synchronous>, transform_indices = @transform_1, window_bounds = array<i64: 32, 128>}, {pipeline_mode = #tpu.pipeline_mode<synchronous>, transform_indices = @transform_2, window_bounds = array<i64: 1, 32>}, {transform_indices = @transform_3, window_bounds = array<i64: 2, 8, 32>}, {transform_indices = @transform_4, window_bounds = array<i64: 2, 8, 32>}]} {
    %c0_i32 = arith.constant 0 : i32
    %0 = arith.cmpi eq, %arg1, %c0_i32 : i32
    %1 = arith.extui %0 : i1 to i32
    %c0_i32_0 = arith.constant 0 : i32
    %2 = arith.cmpi ne, %1, %c0_i32_0 : i32
    scf.if %2 {
      %cst_146 = arith.constant 0.000000e+00 : f32
      %403 = vector.broadcast %cst_146 : f32 to vector<2x32xf32>
      %c0_147 = arith.constant 0 : index
      %c0_148 = arith.constant 0 : index
      %404 = vector.load %arg7[%c0_147, %c0_148] : memref<2x32xf32, #tpu.memory_space<vmem>>, vector<2x32xf32>
      tpu.vector_store %arg7[%c0_147, %c0_148], %403 {strides = array<i32>} : memref<2x32xf32, #tpu.memory_space<vmem>>, vector<2x32xf32>,
      %cst_149 = arith.constant 0.000000e+00 : f32
      %405 = vector.broadcast %cst_149 : f32 to vector<2x32xf32>
      %c0_150 = arith.constant 0 : index
      %c0_151 = arith.constant 0 : index
      %406 = vector.load %arg8[%c0_150, %c0_151] : memref<2x32xf32, #tpu.memory_space<vmem>>, vector<2x32xf32>
      tpu.vector_store %arg8[%c0_150, %c0_151], %405 {strides = array<i32>} : memref<2x32xf32, #tpu.memory_space<vmem>>, vector<2x32xf32>,
    } else {
    }
    %c0 = arith.constant 0 : index
    %c0_1 = arith.constant 0 : index
    %3 = vector.load %arg3[%c0, %c0_1] : memref<32x128xf32, #tpu.memory_space<vmem>>, vector<32x128xf32>
    %c0_2 = arith.constant 0 : index
    %c0_3 = arith.constant 0 : index
    %4 = vector.load %arg4[%c0_2, %c0_3] : memref<1x32xf32, #tpu.memory_space<vmem>>, vector<1x32xf32>
    %5 = vector.shape_cast %4 : vector<1x32xf32> to vector<1x32xf32>
    %6 = vector.broadcast %5 : vector<1x32xf32> to vector<2x32xf32>
    %c0_4 = arith.constant 0 : index
    %c0_5 = arith.constant 0 : index
    %7 = vector.load %arg7[%c0_4, %c0_5] : memref<2x32xf32, #tpu.memory_space<vmem>>, vector<2x32xf32>
    %c0_6 = arith.constant 0 : index
    %c0_7 = arith.constant 0 : index
    %8 = vector.load %arg8[%c0_6, %c0_7] : memref<2x32xf32, #tpu.memory_space<vmem>>, vector<2x32xf32>
    %c0_i32_8 = arith.constant 0 : i32
    %c0_9 = arith.constant 0 : index
    %c0_10 = arith.constant 0 : index
    %9 = arith.index_cast %c0_i32_8 : i32 to index
    %c0_11 = arith.constant 0 : index
    %10 = vector.load %arg2[%c0_9, %c0_10, %9, %c0_11] : memref<3x2x8x32xf32, #tpu.memory_space<vmem>>, vector<1x2x1x32xf32>
    %11 = vector.shape_cast %10 : vector<1x2x1x32xf32> to vector<2x1x32xf32>
    %12 = vector.shape_cast %11 : vector<2x1x32xf32> to vector<2x32xf32>
    %c1 = arith.constant 1 : index
    %c0_12 = arith.constant 0 : index
    %13 = arith.index_cast %c0_i32_8 : i32 to index
    %c0_13 = arith.constant 0 : index
    %14 = vector.load %arg2[%c1, %c0_12, %13, %c0_13] : memref<3x2x8x32xf32, #tpu.memory_space<vmem>>, vector<1x2x1x32xf32>
    %15 = vector.shape_cast %14 : vector<1x2x1x32xf32> to vector<2x1x32xf32>
    %16 = vector.shape_cast %15 : vector<2x1x32xf32> to vector<2x32xf32>
    %c2 = arith.constant 2 : index
    %c0_14 = arith.constant 0 : index
    %17 = arith.index_cast %c0_i32_8 : i32 to index
    %c0_15 = arith.constant 0 : index
    %18 = vector.load %arg2[%c2, %c0_14, %17, %c0_15] : memref<3x2x8x32xf32, #tpu.memory_space<vmem>>, vector<1x2x1x32xf32>
    %19 = vector.shape_cast %18 : vector<1x2x1x32xf32> to vector<2x1x32xf32>
    %20 = vector.shape_cast %19 : vector<2x1x32xf32> to vector<2x32xf32>
    %cst = arith.constant dense<0.000000e+00> : vector<2x128xf32>
    %21 = tpu.matmul %7, %3, %cst {dimension_numbers = #tpu.dot_dimension_numbers<[1], [0], [0], [1], [0, 0, 1, 1], [], []>} : vector<2x32xf32>, vector<32x128xf32>, vector<2x128xf32> -> vector<2x128xf32>
    %22 = vector.extract_strided_slice %21 {offsets = [0, 0], sizes = [2, 32], strides = [1, 1]} : vector<2x128xf32> to vector<2x32xf32>
    %23 = arith.addf %12, %22 : vector<2x32xf32>
    %24 = arith.negf %23 : vector<2x32xf32>
    %25 = math.exp %24 : vector<2x32xf32>
    %cst_16 = arith.constant 1.000000e+00 : f32
    %26 = vector.broadcast %cst_16 : f32 to vector<2x32xf32>
    %27 = arith.addf %26, %25 : vector<2x32xf32>
    %28 = arith.divf %26, %27 : vector<2x32xf32>
    %29 = vector.extract_strided_slice %21 {offsets = [0, 32], sizes = [2, 32], strides = [1, 1]} : vector<2x128xf32> to vector<2x32xf32>
    %30 = arith.addf %12, %29 : vector<2x32xf32>
    %31 = arith.addf %30, %6 : vector<2x32xf32>
    %32 = arith.negf %31 : vector<2x32xf32>
    %33 = math.exp %32 : vector<2x32xf32>
    %cst_17 = arith.constant 1.000000e+00 : f32
    %34 = vector.broadcast %cst_17 : f32 to vector<2x32xf32>
    %35 = arith.addf %34, %33 : vector<2x32xf32>
    %36 = arith.divf %34, %35 : vector<2x32xf32>
    %37 = arith.mulf %36, %8 : vector<2x32xf32>
    %38 = vector.extract_strided_slice %21 {offsets = [0, 64], sizes = [2, 32], strides = [1, 1]} : vector<2x128xf32> to vector<2x32xf32>
    %39 = arith.addf %16, %38 : vector<2x32xf32>
    %40 = math.tanh %39 : vector<2x32xf32>
    %41 = arith.mulf %28, %40 : vector<2x32xf32>
    %42 = arith.addf %37, %41 : vector<2x32xf32>
    %43 = vector.extract_strided_slice %21 {offsets = [0, 96], sizes = [2, 32], strides = [1, 1]} : vector<2x128xf32> to vector<2x32xf32>
    %44 = arith.addf %20, %43 : vector<2x32xf32>
    %45 = arith.negf %44 : vector<2x32xf32>
    %46 = math.exp %45 : vector<2x32xf32>
    %cst_18 = arith.constant 1.000000e+00 : f32
    %47 = vector.broadcast %cst_18 : f32 to vector<2x32xf32>
    %48 = arith.addf %47, %46 : vector<2x32xf32>
    %49 = arith.divf %47, %48 : vector<2x32xf32>
    %50 = math.tanh %42 : vector<2x32xf32>
    %51 = arith.mulf %49, %50 : vector<2x32xf32>
    %52 = vector.shape_cast %51 : vector<2x32xf32> to vector<2x1x32xf32>
    %c0_19 = arith.constant 0 : index
    %53 = arith.index_cast %c0_i32_8 : i32 to index
    %c0_20 = arith.constant 0 : index
    %54 = vector.load %arg5[%c0_19, %53, %c0_20] : memref<2x8x32xf32, #tpu.memory_space<vmem>>, vector<2x1x32xf32>
    tpu.vector_store %arg5[%c0_19, %53, %c0_20], %52 {strides = array<i32>} : memref<2x8x32xf32, #tpu.memory_space<vmem>>, vector<2x1x32xf32>,
    %55 = vector.shape_cast %42 : vector<2x32xf32> to vector<2x1x32xf32>
    %c0_21 = arith.constant 0 : index
    %56 = arith.index_cast %c0_i32_8 : i32 to index
    %c0_22 = arith.constant 0 : index
    %57 = vector.load %arg6[%c0_21, %56, %c0_22] : memref<2x8x32xf32, #tpu.memory_space<vmem>>, vector<2x1x32xf32>
    tpu.vector_store %arg6[%c0_21, %56, %c0_22], %55 {strides = array<i32>} : memref<2x8x32xf32, #tpu.memory_space<vmem>>, vector<2x1x32xf32>,
    %c1_i32 = arith.constant 1 : i32
    %c0_23 = arith.constant 0 : index
    %c0_24 = arith.constant 0 : index
    %58 = arith.index_cast %c1_i32 : i32 to index
    %c0_25 = arith.constant 0 : index
    %59 = vector.load %arg2[%c0_23, %c0_24, %58, %c0_25] : memref<3x2x8x32xf32, #tpu.memory_space<vmem>>, vector<1x2x1x32xf32>
    %60 = vector.shape_cast %59 : vector<1x2x1x32xf32> to vector<2x1x32xf32>
    %61 = vector.shape_cast %60 : vector<2x1x32xf32> to vector<2x32xf32>
    %c1_26 = arith.constant 1 : index
    %c0_27 = arith.constant 0 : index
    %62 = arith.index_cast %c1_i32 : i32 to index
    %c0_28 = arith.constant 0 : index
    %63 = vector.load %arg2[%c1_26, %c0_27, %62, %c0_28] : memref<3x2x8x32xf32, #tpu.memory_space<vmem>>, vector<1x2x1x32xf32>
    %64 = vector.shape_cast %63 : vector<1x2x1x32xf32> to vector<2x1x32xf32>
    %65 = vector.shape_cast %64 : vector<2x1x32xf32> to vector<2x32xf32>
    %c2_29 = arith.constant 2 : index
    %c0_30 = arith.constant 0 : index
    %66 = arith.index_cast %c1_i32 : i32 to index
    %c0_31 = arith.constant 0 : index
    %67 = vector.load %arg2[%c2_29, %c0_30, %66, %c0_31] : memref<3x2x8x32xf32, #tpu.memory_space<vmem>>, vector<1x2x1x32xf32>
    %68 = vector.shape_cast %67 : vector<1x2x1x32xf32> to vector<2x1x32xf32>
    %69 = vector.shape_cast %68 : vector<2x1x32xf32> to vector<2x32xf32>
    %cst_32 = arith.constant dense<0.000000e+00> : vector<2x128xf32>
    %70 = tpu.matmul %51, %3, %cst_32 {dimension_numbers = #tpu.dot_dimension_numbers<[1], [0], [0], [1], [0, 0, 1, 1], [], []>} : vector<2x32xf32>, vector<32x128xf32>, vector<2x128xf32> -> vector<2x128xf32>
    %71 = vector.extract_strided_slice %70 {offsets = [0, 0], sizes = [2, 32], strides = [1, 1]} : vector<2x128xf32> to vector<2x32xf32>
    %72 = arith.addf %61, %71 : vector<2x32xf32>
    %73 = arith.negf %72 : vector<2x32xf32>
    %74 = math.exp %73 : vector<2x32xf32>
    %cst_33 = arith.constant 1.000000e+00 : f32
    %75 = vector.broadcast %cst_33 : f32 to vector<2x32xf32>
    %76 = arith.addf %75, %74 : vector<2x32xf32>
    %77 = arith.divf %75, %76 : vector<2x32xf32>
    %78 = vector.extract_strided_slice %70 {offsets = [0, 32], sizes = [2, 32], strides = [1, 1]} : vector<2x128xf32> to vector<2x32xf32>
    %79 = arith.addf %61, %78 : vector<2x32xf32>
    %80 = arith.addf %79, %6 : vector<2x32xf32>
    %81 = arith.negf %80 : vector<2x32xf32>
    %82 = math.exp %81 : vector<2x32xf32>
    %cst_34 = arith.constant 1.000000e+00 : f32
    %83 = vector.broadcast %cst_34 : f32 to vector<2x32xf32>
    %84 = arith.addf %83, %82 : vector<2x32xf32>
    %85 = arith.divf %83, %84 : vector<2x32xf32>
    %86 = arith.mulf %85, %42 : vector<2x32xf32>
    %87 = vector.extract_strided_slice %70 {offsets = [0, 64], sizes = [2, 32], strides = [1, 1]} : vector<2x128xf32> to vector<2x32xf32>
    %88 = arith.addf %65, %87 : vector<2x32xf32>
    %89 = math.tanh %88 : vector<2x32xf32>
    %90 = arith.mulf %77, %89 : vector<2x32xf32>
    %91 = arith.addf %86, %90 : vector<2x32xf32>
    %92 = vector.extract_strided_slice %70 {offsets = [0, 96], sizes = [2, 32], strides = [1, 1]} : vector<2x128xf32> to vector<2x32xf32>
    %93 = arith.addf %69, %92 : vector<2x32xf32>
    %94 = arith.negf %93 : vector<2x32xf32>
    %95 = math.exp %94 : vector<2x32xf32>
    %cst_35 = arith.constant 1.000000e+00 : f32
    %96 = vector.broadcast %cst_35 : f32 to vector<2x32xf32>
    %97 = arith.addf %96, %95 : vector<2x32xf32>
    %98 = arith.divf %96, %97 : vector<2x32xf32>
    %99 = math.tanh %91 : vector<2x32xf32>
    %100 = arith.mulf %98, %99 : vector<2x32xf32>
    %101 = vector.shape_cast %100 : vector<2x32xf32> to vector<2x1x32xf32>
    %c0_36 = arith.constant 0 : index
    %102 = arith.index_cast %c1_i32 : i32 to index
    %c0_37 = arith.constant 0 : index
    %103 = vector.load %arg5[%c0_36, %102, %c0_37] : memref<2x8x32xf32, #tpu.memory_space<vmem>>, vector<2x1x32xf32>
    tpu.vector_store %arg5[%c0_36, %102, %c0_37], %101 {strides = array<i32>} : memref<2x8x32xf32, #tpu.memory_space<vmem>>, vector<2x1x32xf32>,
    %104 = vector.shape_cast %91 : vector<2x32xf32> to vector<2x1x32xf32>
    %c0_38 = arith.constant 0 : index
    %105 = arith.index_cast %c1_i32 : i32 to index
    %c0_39 = arith.constant 0 : index
    %106 = vector.load %arg6[%c0_38, %105, %c0_39] : memref<2x8x32xf32, #tpu.memory_space<vmem>>, vector<2x1x32xf32>
    tpu.vector_store %arg6[%c0_38, %105, %c0_39], %104 {strides = array<i32>} : memref<2x8x32xf32, #tpu.memory_space<vmem>>, vector<2x1x32xf32>,
    %c2_i32 = arith.constant 2 : i32
    %c0_40 = arith.constant 0 : index
    %c0_41 = arith.constant 0 : index
    %107 = arith.index_cast %c2_i32 : i32 to index
    %c0_42 = arith.constant 0 : index
    %108 = vector.load %arg2[%c0_40, %c0_41, %107, %c0_42] : memref<3x2x8x32xf32, #tpu.memory_space<vmem>>, vector<1x2x1x32xf32>
    %109 = vector.shape_cast %108 : vector<1x2x1x32xf32> to vector<2x1x32xf32>
    %110 = vector.shape_cast %109 : vector<2x1x32xf32> to vector<2x32xf32>
    %c1_43 = arith.constant 1 : index
    %c0_44 = arith.constant 0 : index
    %111 = arith.index_cast %c2_i32 : i32 to index
    %c0_45 = arith.constant 0 : index
    %112 = vector.load %arg2[%c1_43, %c0_44, %111, %c0_45] : memref<3x2x8x32xf32, #tpu.memory_space<vmem>>, vector<1x2x1x32xf32>
    %113 = vector.shape_cast %112 : vector<1x2x1x32xf32> to vector<2x1x32xf32>
    %114 = vector.shape_cast %113 : vector<2x1x32xf32> to vector<2x32xf32>
    %c2_46 = arith.constant 2 : index
    %c0_47 = arith.constant 0 : index
    %115 = arith.index_cast %c2_i32 : i32 to index
    %c0_48 = arith.constant 0 : index
    %116 = vector.load %arg2[%c2_46, %c0_47, %115, %c0_48] : memref<3x2x8x32xf32, #tpu.memory_space<vmem>>, vector<1x2x1x32xf32>
    %117 = vector.shape_cast %116 : vector<1x2x1x32xf32> to vector<2x1x32xf32>
    %118 = vector.shape_cast %117 : vector<2x1x32xf32> to vector<2x32xf32>
    %cst_49 = arith.constant dense<0.000000e+00> : vector<2x128xf32>
    %119 = tpu.matmul %100, %3, %cst_49 {dimension_numbers = #tpu.dot_dimension_numbers<[1], [0], [0], [1], [0, 0, 1, 1], [], []>} : vector<2x32xf32>, vector<32x128xf32>, vector<2x128xf32> -> vector<2x128xf32>
    %120 = vector.extract_strided_slice %119 {offsets = [0, 0], sizes = [2, 32], strides = [1, 1]} : vector<2x128xf32> to vector<2x32xf32>
    %121 = arith.addf %110, %120 : vector<2x32xf32>
    %122 = arith.negf %121 : vector<2x32xf32>
    %123 = math.exp %122 : vector<2x32xf32>
    %cst_50 = arith.constant 1.000000e+00 : f32
    %124 = vector.broadcast %cst_50 : f32 to vector<2x32xf32>
    %125 = arith.addf %124, %123 : vector<2x32xf32>
    %126 = arith.divf %124, %125 : vector<2x32xf32>
    %127 = vector.extract_strided_slice %119 {offsets = [0, 32], sizes = [2, 32], strides = [1, 1]} : vector<2x128xf32> to vector<2x32xf32>
    %128 = arith.addf %110, %127 : vector<2x32xf32>
    %129 = arith.addf %128, %6 : vector<2x32xf32>
    %130 = arith.negf %129 : vector<2x32xf32>
    %131 = math.exp %130 : vector<2x32xf32>
    %cst_51 = arith.constant 1.000000e+00 : f32
    %132 = vector.broadcast %cst_51 : f32 to vector<2x32xf32>
    %133 = arith.addf %132, %131 : vector<2x32xf32>
    %134 = arith.divf %132, %133 : vector<2x32xf32>
    %135 = arith.mulf %134, %91 : vector<2x32xf32>
    %136 = vector.extract_strided_slice %119 {offsets = [0, 64], sizes = [2, 32], strides = [1, 1]} : vector<2x128xf32> to vector<2x32xf32>
    %137 = arith.addf %114, %136 : vector<2x32xf32>
    %138 = math.tanh %137 : vector<2x32xf32>
    %139 = arith.mulf %126, %138 : vector<2x32xf32>
    %140 = arith.addf %135, %139 : vector<2x32xf32>
    %141 = vector.extract_strided_slice %119 {offsets = [0, 96], sizes = [2, 32], strides = [1, 1]} : vector<2x128xf32> to vector<2x32xf32>
    %142 = arith.addf %118, %141 : vector<2x32xf32>
    %143 = arith.negf %142 : vector<2x32xf32>
    %144 = math.exp %143 : vector<2x32xf32>
    %cst_52 = arith.constant 1.000000e+00 : f32
    %145 = vector.broadcast %cst_52 : f32 to vector<2x32xf32>
    %146 = arith.addf %145, %144 : vector<2x32xf32>
    %147 = arith.divf %145, %146 : vector<2x32xf32>
    %148 = math.tanh %140 : vector<2x32xf32>
    %149 = arith.mulf %147, %148 : vector<2x32xf32>
    %150 = vector.shape_cast %149 : vector<2x32xf32> to vector<2x1x32xf32>
    %c0_53 = arith.constant 0 : index
    %151 = arith.index_cast %c2_i32 : i32 to index
    %c0_54 = arith.constant 0 : index
    %152 = vector.load %arg5[%c0_53, %151, %c0_54] : memref<2x8x32xf32, #tpu.memory_space<vmem>>, vector<2x1x32xf32>
    tpu.vector_store %arg5[%c0_53, %151, %c0_54], %150 {strides = array<i32>} : memref<2x8x32xf32, #tpu.memory_space<vmem>>, vector<2x1x32xf32>,
    %153 = vector.shape_cast %140 : vector<2x32xf32> to vector<2x1x32xf32>
    %c0_55 = arith.constant 0 : index
    %154 = arith.index_cast %c2_i32 : i32 to index
    %c0_56 = arith.constant 0 : index
    %155 = vector.load %arg6[%c0_55, %154, %c0_56] : memref<2x8x32xf32, #tpu.memory_space<vmem>>, vector<2x1x32xf32>
    tpu.vector_store %arg6[%c0_55, %154, %c0_56], %153 {strides = array<i32>} : memref<2x8x32xf32, #tpu.memory_space<vmem>>, vector<2x1x32xf32>,
    %c3_i32 = arith.constant 3 : i32
    %c0_57 = arith.constant 0 : index
    %c0_58 = arith.constant 0 : index
    %156 = arith.index_cast %c3_i32 : i32 to index
    %c0_59 = arith.constant 0 : index
    %157 = vector.load %arg2[%c0_57, %c0_58, %156, %c0_59] : memref<3x2x8x32xf32, #tpu.memory_space<vmem>>, vector<1x2x1x32xf32>
    %158 = vector.shape_cast %157 : vector<1x2x1x32xf32> to vector<2x1x32xf32>
    %159 = vector.shape_cast %158 : vector<2x1x32xf32> to vector<2x32xf32>
    %c1_60 = arith.constant 1 : index
    %c0_61 = arith.constant 0 : index
    %160 = arith.index_cast %c3_i32 : i32 to index
    %c0_62 = arith.constant 0 : index
    %161 = vector.load %arg2[%c1_60, %c0_61, %160, %c0_62] : memref<3x2x8x32xf32, #tpu.memory_space<vmem>>, vector<1x2x1x32xf32>
    %162 = vector.shape_cast %161 : vector<1x2x1x32xf32> to vector<2x1x32xf32>
    %163 = vector.shape_cast %162 : vector<2x1x32xf32> to vector<2x32xf32>
    %c2_63 = arith.constant 2 : index
    %c0_64 = arith.constant 0 : index
    %164 = arith.index_cast %c3_i32 : i32 to index
    %c0_65 = arith.constant 0 : index
    %165 = vector.load %arg2[%c2_63, %c0_64, %164, %c0_65] : memref<3x2x8x32xf32, #tpu.memory_space<vmem>>, vector<1x2x1x32xf32>
    %166 = vector.shape_cast %165 : vector<1x2x1x32xf32> to vector<2x1x32xf32>
    %167 = vector.shape_cast %166 : vector<2x1x32xf32> to vector<2x32xf32>
    %cst_66 = arith.constant dense<0.000000e+00> : vector<2x128xf32>
    %168 = tpu.matmul %149, %3, %cst_66 {dimension_numbers = #tpu.dot_dimension_numbers<[1], [0], [0], [1], [0, 0, 1, 1], [], []>} : vector<2x32xf32>, vector<32x128xf32>, vector<2x128xf32> -> vector<2x128xf32>
    %169 = vector.extract_strided_slice %168 {offsets = [0, 0], sizes = [2, 32], strides = [1, 1]} : vector<2x128xf32> to vector<2x32xf32>
    %170 = arith.addf %159, %169 : vector<2x32xf32>
    %171 = arith.negf %170 : vector<2x32xf32>
    %172 = math.exp %171 : vector<2x32xf32>
    %cst_67 = arith.constant 1.000000e+00 : f32
    %173 = vector.broadcast %cst_67 : f32 to vector<2x32xf32>
    %174 = arith.addf %173, %172 : vector<2x32xf32>
    %175 = arith.divf %173, %174 : vector<2x32xf32>
    %176 = vector.extract_strided_slice %168 {offsets = [0, 32], sizes = [2, 32], strides = [1, 1]} : vector<2x128xf32> to vector<2x32xf32>
    %177 = arith.addf %159, %176 : vector<2x32xf32>
    %178 = arith.addf %177, %6 : vector<2x32xf32>
    %179 = arith.negf %178 : vector<2x32xf32>
    %180 = math.exp %179 : vector<2x32xf32>
    %cst_68 = arith.constant 1.000000e+00 : f32
    %181 = vector.broadcast %cst_68 : f32 to vector<2x32xf32>
    %182 = arith.addf %181, %180 : vector<2x32xf32>
    %183 = arith.divf %181, %182 : vector<2x32xf32>
    %184 = arith.mulf %183, %140 : vector<2x32xf32>
    %185 = vector.extract_strided_slice %168 {offsets = [0, 64], sizes = [2, 32], strides = [1, 1]} : vector<2x128xf32> to vector<2x32xf32>
    %186 = arith.addf %163, %185 : vector<2x32xf32>
    %187 = math.tanh %186 : vector<2x32xf32>
    %188 = arith.mulf %175, %187 : vector<2x32xf32>
    %189 = arith.addf %184, %188 : vector<2x32xf32>
    %190 = vector.extract_strided_slice %168 {offsets = [0, 96], sizes = [2, 32], strides = [1, 1]} : vector<2x128xf32> to vector<2x32xf32>
    %191 = arith.addf %167, %190 : vector<2x32xf32>
    %192 = arith.negf %191 : vector<2x32xf32>
    %193 = math.exp %192 : vector<2x32xf32>
    %cst_69 = arith.constant 1.000000e+00 : f32
    %194 = vector.broadcast %cst_69 : f32 to vector<2x32xf32>
    %195 = arith.addf %194, %193 : vector<2x32xf32>
    %196 = arith.divf %194, %195 : vector<2x32xf32>
    %197 = math.tanh %189 : vector<2x32xf32>
    %198 = arith.mulf %196, %197 : vector<2x32xf32>
    %199 = vector.shape_cast %198 : vector<2x32xf32> to vector<2x1x32xf32>
    %c0_70 = arith.constant 0 : index
    %200 = arith.index_cast %c3_i32 : i32 to index
    %c0_71 = arith.constant 0 : index
    %201 = vector.load %arg5[%c0_70, %200, %c0_71] : memref<2x8x32xf32, #tpu.memory_space<vmem>>, vector<2x1x32xf32>
    tpu.vector_store %arg5[%c0_70, %200, %c0_71], %199 {strides = array<i32>} : memref<2x8x32xf32, #tpu.memory_space<vmem>>, vector<2x1x32xf32>,
    %202 = vector.shape_cast %189 : vector<2x32xf32> to vector<2x1x32xf32>
    %c0_72 = arith.constant 0 : index
    %203 = arith.index_cast %c3_i32 : i32 to index
    %c0_73 = arith.constant 0 : index
    %204 = vector.load %arg6[%c0_72, %203, %c0_73] : memref<2x8x32xf32, #tpu.memory_space<vmem>>, vector<2x1x32xf32>
    tpu.vector_store %arg6[%c0_72, %203, %c0_73], %202 {strides = array<i32>} : memref<2x8x32xf32, #tpu.memory_space<vmem>>, vector<2x1x32xf32>,
    %c4_i32 = arith.constant 4 : i32
    %c0_74 = arith.constant 0 : index
    %c0_75 = arith.constant 0 : index
    %205 = arith.index_cast %c4_i32 : i32 to index
    %c0_76 = arith.constant 0 : index
    %206 = vector.load %arg2[%c0_74, %c0_75, %205, %c0_76] : memref<3x2x8x32xf32, #tpu.memory_space<vmem>>, vector<1x2x1x32xf32>
    %207 = vector.shape_cast %206 : vector<1x2x1x32xf32> to vector<2x1x32xf32>
    %208 = vector.shape_cast %207 : vector<2x1x32xf32> to vector<2x32xf32>
    %c1_77 = arith.constant 1 : index
    %c0_78 = arith.constant 0 : index
    %209 = arith.index_cast %c4_i32 : i32 to index
    %c0_79 = arith.constant 0 : index
    %210 = vector.load %arg2[%c1_77, %c0_78, %209, %c0_79] : memref<3x2x8x32xf32, #tpu.memory_space<vmem>>, vector<1x2x1x32xf32>
    %211 = vector.shape_cast %210 : vector<1x2x1x32xf32> to vector<2x1x32xf32>
    %212 = vector.shape_cast %211 : vector<2x1x32xf32> to vector<2x32xf32>
    %c2_80 = arith.constant 2 : index
    %c0_81 = arith.constant 0 : index
    %213 = arith.index_cast %c4_i32 : i32 to index
    %c0_82 = arith.constant 0 : index
    %214 = vector.load %arg2[%c2_80, %c0_81, %213, %c0_82] : memref<3x2x8x32xf32, #tpu.memory_space<vmem>>, vector<1x2x1x32xf32>
    %215 = vector.shape_cast %214 : vector<1x2x1x32xf32> to vector<2x1x32xf32>
    %216 = vector.shape_cast %215 : vector<2x1x32xf32> to vector<2x32xf32>
    %cst_83 = arith.constant dense<0.000000e+00> : vector<2x128xf32>
    %217 = tpu.matmul %198, %3, %cst_83 {dimension_numbers = #tpu.dot_dimension_numbers<[1], [0], [0], [1], [0, 0, 1, 1], [], []>} : vector<2x32xf32>, vector<32x128xf32>, vector<2x128xf32> -> vector<2x128xf32>
    %218 = vector.extract_strided_slice %217 {offsets = [0, 0], sizes = [2, 32], strides = [1, 1]} : vector<2x128xf32> to vector<2x32xf32>
    %219 = arith.addf %208, %218 : vector<2x32xf32>
    %220 = arith.negf %219 : vector<2x32xf32>
    %221 = math.exp %220 : vector<2x32xf32>
    %cst_84 = arith.constant 1.000000e+00 : f32
    %222 = vector.broadcast %cst_84 : f32 to vector<2x32xf32>
    %223 = arith.addf %222, %221 : vector<2x32xf32>
    %224 = arith.divf %222, %223 : vector<2x32xf32>
    %225 = vector.extract_strided_slice %217 {offsets = [0, 32], sizes = [2, 32], strides = [1, 1]} : vector<2x128xf32> to vector<2x32xf32>
    %226 = arith.addf %208, %225 : vector<2x32xf32>
    %227 = arith.addf %226, %6 : vector<2x32xf32>
    %228 = arith.negf %227 : vector<2x32xf32>
    %229 = math.exp %228 : vector<2x32xf32>
    %cst_85 = arith.constant 1.000000e+00 : f32
    %230 = vector.broadcast %cst_85 : f32 to vector<2x32xf32>
    %231 = arith.addf %230, %229 : vector<2x32xf32>
    %232 = arith.divf %230, %231 : vector<2x32xf32>
    %233 = arith.mulf %232, %189 : vector<2x32xf32>
    %234 = vector.extract_strided_slice %217 {offsets = [0, 64], sizes = [2, 32], strides = [1, 1]} : vector<2x128xf32> to vector<2x32xf32>
    %235 = arith.addf %212, %234 : vector<2x32xf32>
    %236 = math.tanh %235 : vector<2x32xf32>
    %237 = arith.mulf %224, %236 : vector<2x32xf32>
    %238 = arith.addf %233, %237 : vector<2x32xf32>
    %239 = vector.extract_strided_slice %217 {offsets = [0, 96], sizes = [2, 32], strides = [1, 1]} : vector<2x128xf32> to vector<2x32xf32>
    %240 = arith.addf %216, %239 : vector<2x32xf32>
    %241 = arith.negf %240 : vector<2x32xf32>
    %242 = math.exp %241 : vector<2x32xf32>
    %cst_86 = arith.constant 1.000000e+00 : f32
    %243 = vector.broadcast %cst_86 : f32 to vector<2x32xf32>
    %244 = arith.addf %243, %242 : vector<2x32xf32>
    %245 = arith.divf %243, %244 : vector<2x32xf32>
    %246 = math.tanh %238 : vector<2x32xf32>
    %247 = arith.mulf %245, %246 : vector<2x32xf32>
    %248 = vector.shape_cast %247 : vector<2x32xf32> to vector<2x1x32xf32>
    %c0_87 = arith.constant 0 : index
    %249 = arith.index_cast %c4_i32 : i32 to index
    %c0_88 = arith.constant 0 : index
    %250 = vector.load %arg5[%c0_87, %249, %c0_88] : memref<2x8x32xf32, #tpu.memory_space<vmem>>, vector<2x1x32xf32>
    tpu.vector_store %arg5[%c0_87, %249, %c0_88], %248 {strides = array<i32>} : memref<2x8x32xf32, #tpu.memory_space<vmem>>, vector<2x1x32xf32>,
    %251 = vector.shape_cast %238 : vector<2x32xf32> to vector<2x1x32xf32>
    %c0_89 = arith.constant 0 : index
    %252 = arith.index_cast %c4_i32 : i32 to index
    %c0_90 = arith.constant 0 : index
    %253 = vector.load %arg6[%c0_89, %252, %c0_90] : memref<2x8x32xf32, #tpu.memory_space<vmem>>, vector<2x1x32xf32>
    tpu.vector_store %arg6[%c0_89, %252, %c0_90], %251 {strides = array<i32>} : memref<2x8x32xf32, #tpu.memory_space<vmem>>, vector<2x1x32xf32>,
    %c5_i32 = arith.constant 5 : i32
    %c0_91 = arith.constant 0 : index
    %c0_92 = arith.constant 0 : index
    %254 = arith.index_cast %c5_i32 : i32 to index
    %c0_93 = arith.constant 0 : index
    %255 = vector.load %arg2[%c0_91, %c0_92, %254, %c0_93] : memref<3x2x8x32xf32, #tpu.memory_space<vmem>>, vector<1x2x1x32xf32>
    %256 = vector.shape_cast %255 : vector<1x2x1x32xf32> to vector<2x1x32xf32>
    %257 = vector.shape_cast %256 : vector<2x1x32xf32> to vector<2x32xf32>
    %c1_94 = arith.constant 1 : index
    %c0_95 = arith.constant 0 : index
    %258 = arith.index_cast %c5_i32 : i32 to index
    %c0_96 = arith.constant 0 : index
    %259 = vector.load %arg2[%c1_94, %c0_95, %258, %c0_96] : memref<3x2x8x32xf32, #tpu.memory_space<vmem>>, vector<1x2x1x32xf32>
    %260 = vector.shape_cast %259 : vector<1x2x1x32xf32> to vector<2x1x32xf32>
    %261 = vector.shape_cast %260 : vector<2x1x32xf32> to vector<2x32xf32>
    %c2_97 = arith.constant 2 : index
    %c0_98 = arith.constant 0 : index
    %262 = arith.index_cast %c5_i32 : i32 to index
    %c0_99 = arith.constant 0 : index
    %263 = vector.load %arg2[%c2_97, %c0_98, %262, %c0_99] : memref<3x2x8x32xf32, #tpu.memory_space<vmem>>, vector<1x2x1x32xf32>
    %264 = vector.shape_cast %263 : vector<1x2x1x32xf32> to vector<2x1x32xf32>
    %265 = vector.shape_cast %264 : vector<2x1x32xf32> to vector<2x32xf32>
    %cst_100 = arith.constant dense<0.000000e+00> : vector<2x128xf32>
    %266 = tpu.matmul %247, %3, %cst_100 {dimension_numbers = #tpu.dot_dimension_numbers<[1], [0], [0], [1], [0, 0, 1, 1], [], []>} : vector<2x32xf32>, vector<32x128xf32>, vector<2x128xf32> -> vector<2x128xf32>
    %267 = vector.extract_strided_slice %266 {offsets = [0, 0], sizes = [2, 32], strides = [1, 1]} : vector<2x128xf32> to vector<2x32xf32>
    %268 = arith.addf %257, %267 : vector<2x32xf32>
    %269 = arith.negf %268 : vector<2x32xf32>
    %270 = math.exp %269 : vector<2x32xf32>
    %cst_101 = arith.constant 1.000000e+00 : f32
    %271 = vector.broadcast %cst_101 : f32 to vector<2x32xf32>
    %272 = arith.addf %271, %270 : vector<2x32xf32>
    %273 = arith.divf %271, %272 : vector<2x32xf32>
    %274 = vector.extract_strided_slice %266 {offsets = [0, 32], sizes = [2, 32], strides = [1, 1]} : vector<2x128xf32> to vector<2x32xf32>
    %275 = arith.addf %257, %274 : vector<2x32xf32>
    %276 = arith.addf %275, %6 : vector<2x32xf32>
    %277 = arith.negf %276 : vector<2x32xf32>
    %278 = math.exp %277 : vector<2x32xf32>
    %cst_102 = arith.constant 1.000000e+00 : f32
    %279 = vector.broadcast %cst_102 : f32 to vector<2x32xf32>
    %280 = arith.addf %279, %278 : vector<2x32xf32>
    %281 = arith.divf %279, %280 : vector<2x32xf32>
    %282 = arith.mulf %281, %238 : vector<2x32xf32>
    %283 = vector.extract_strided_slice %266 {offsets = [0, 64], sizes = [2, 32], strides = [1, 1]} : vector<2x128xf32> to vector<2x32xf32>
    %284 = arith.addf %261, %283 : vector<2x32xf32>
    %285 = math.tanh %284 : vector<2x32xf32>
    %286 = arith.mulf %273, %285 : vector<2x32xf32>
    %287 = arith.addf %282, %286 : vector<2x32xf32>
    %288 = vector.extract_strided_slice %266 {offsets = [0, 96], sizes = [2, 32], strides = [1, 1]} : vector<2x128xf32> to vector<2x32xf32>
    %289 = arith.addf %265, %288 : vector<2x32xf32>
    %290 = arith.negf %289 : vector<2x32xf32>
    %291 = math.exp %290 : vector<2x32xf32>
    %cst_103 = arith.constant 1.000000e+00 : f32
    %292 = vector.broadcast %cst_103 : f32 to vector<2x32xf32>
    %293 = arith.addf %292, %291 : vector<2x32xf32>
    %294 = arith.divf %292, %293 : vector<2x32xf32>
    %295 = math.tanh %287 : vector<2x32xf32>
    %296 = arith.mulf %294, %295 : vector<2x32xf32>
    %297 = vector.shape_cast %296 : vector<2x32xf32> to vector<2x1x32xf32>
    %c0_104 = arith.constant 0 : index
    %298 = arith.index_cast %c5_i32 : i32 to index
    %c0_105 = arith.constant 0 : index
    %299 = vector.load %arg5[%c0_104, %298, %c0_105] : memref<2x8x32xf32, #tpu.memory_space<vmem>>, vector<2x1x32xf32>
    tpu.vector_store %arg5[%c0_104, %298, %c0_105], %297 {strides = array<i32>} : memref<2x8x32xf32, #tpu.memory_space<vmem>>, vector<2x1x32xf32>,
    %300 = vector.shape_cast %287 : vector<2x32xf32> to vector<2x1x32xf32>
    %c0_106 = arith.constant 0 : index
    %301 = arith.index_cast %c5_i32 : i32 to index
    %c0_107 = arith.constant 0 : index
    %302 = vector.load %arg6[%c0_106, %301, %c0_107] : memref<2x8x32xf32, #tpu.memory_space<vmem>>, vector<2x1x32xf32>
    tpu.vector_store %arg6[%c0_106, %301, %c0_107], %300 {strides = array<i32>} : memref<2x8x32xf32, #tpu.memory_space<vmem>>, vector<2x1x32xf32>,
    %c6_i32 = arith.constant 6 : i32
    %c0_108 = arith.constant 0 : index
    %c0_109 = arith.constant 0 : index
    %303 = arith.index_cast %c6_i32 : i32 to index
    %c0_110 = arith.constant 0 : index
    %304 = vector.load %arg2[%c0_108, %c0_109, %303, %c0_110] : memref<3x2x8x32xf32, #tpu.memory_space<vmem>>, vector<1x2x1x32xf32>
    %305 = vector.shape_cast %304 : vector<1x2x1x32xf32> to vector<2x1x32xf32>
    %306 = vector.shape_cast %305 : vector<2x1x32xf32> to vector<2x32xf32>
    %c1_111 = arith.constant 1 : index
    %c0_112 = arith.constant 0 : index
    %307 = arith.index_cast %c6_i32 : i32 to index
    %c0_113 = arith.constant 0 : index
    %308 = vector.load %arg2[%c1_111, %c0_112, %307, %c0_113] : memref<3x2x8x32xf32, #tpu.memory_space<vmem>>, vector<1x2x1x32xf32>
    %309 = vector.shape_cast %308 : vector<1x2x1x32xf32> to vector<2x1x32xf32>
    %310 = vector.shape_cast %309 : vector<2x1x32xf32> to vector<2x32xf32>
    %c2_114 = arith.constant 2 : index
    %c0_115 = arith.constant 0 : index
    %311 = arith.index_cast %c6_i32 : i32 to index
    %c0_116 = arith.constant 0 : index
    %312 = vector.load %arg2[%c2_114, %c0_115, %311, %c0_116] : memref<3x2x8x32xf32, #tpu.memory_space<vmem>>, vector<1x2x1x32xf32>
    %313 = vector.shape_cast %312 : vector<1x2x1x32xf32> to vector<2x1x32xf32>
    %314 = vector.shape_cast %313 : vector<2x1x32xf32> to vector<2x32xf32>
    %cst_117 = arith.constant dense<0.000000e+00> : vector<2x128xf32>
    %315 = tpu.matmul %296, %3, %cst_117 {dimension_numbers = #tpu.dot_dimension_numbers<[1], [0], [0], [1], [0, 0, 1, 1], [], []>} : vector<2x32xf32>, vector<32x128xf32>, vector<2x128xf32> -> vector<2x128xf32>
    %316 = vector.extract_strided_slice %315 {offsets = [0, 0], sizes = [2, 32], strides = [1, 1]} : vector<2x128xf32> to vector<2x32xf32>
    %317 = arith.addf %306, %316 : vector<2x32xf32>
    %318 = arith.negf %317 : vector<2x32xf32>
    %319 = math.exp %318 : vector<2x32xf32>
    %cst_118 = arith.constant 1.000000e+00 : f32
    %320 = vector.broadcast %cst_118 : f32 to vector<2x32xf32>
    %321 = arith.addf %320, %319 : vector<2x32xf32>
    %322 = arith.divf %320, %321 : vector<2x32xf32>
    %323 = vector.extract_strided_slice %315 {offsets = [0, 32], sizes = [2, 32], strides = [1, 1]} : vector<2x128xf32> to vector<2x32xf32>
    %324 = arith.addf %306, %323 : vector<2x32xf32>
    %325 = arith.addf %324, %6 : vector<2x32xf32>
    %326 = arith.negf %325 : vector<2x32xf32>
    %327 = math.exp %326 : vector<2x32xf32>
    %cst_119 = arith.constant 1.000000e+00 : f32
    %328 = vector.broadcast %cst_119 : f32 to vector<2x32xf32>
    %329 = arith.addf %328, %327 : vector<2x32xf32>
    %330 = arith.divf %328, %329 : vector<2x32xf32>
    %331 = arith.mulf %330, %287 : vector<2x32xf32>
    %332 = vector.extract_strided_slice %315 {offsets = [0, 64], sizes = [2, 32], strides = [1, 1]} : vector<2x128xf32> to vector<2x32xf32>
    %333 = arith.addf %310, %332 : vector<2x32xf32>
    %334 = math.tanh %333 : vector<2x32xf32>
    %335 = arith.mulf %322, %334 : vector<2x32xf32>
    %336 = arith.addf %331, %335 : vector<2x32xf32>
    %337 = vector.extract_strided_slice %315 {offsets = [0, 96], sizes = [2, 32], strides = [1, 1]} : vector<2x128xf32> to vector<2x32xf32>
    %338 = arith.addf %314, %337 : vector<2x32xf32>
    %339 = arith.negf %338 : vector<2x32xf32>
    %340 = math.exp %339 : vector<2x32xf32>
    %cst_120 = arith.constant 1.000000e+00 : f32
    %341 = vector.broadcast %cst_120 : f32 to vector<2x32xf32>
    %342 = arith.addf %341, %340 : vector<2x32xf32>
    %343 = arith.divf %341, %342 : vector<2x32xf32>
    %344 = math.tanh %336 : vector<2x32xf32>
    %345 = arith.mulf %343, %344 : vector<2x32xf32>
    %346 = vector.shape_cast %345 : vector<2x32xf32> to vector<2x1x32xf32>
    %c0_121 = arith.constant 0 : index
    %347 = arith.index_cast %c6_i32 : i32 to index
    %c0_122 = arith.constant 0 : index
    %348 = vector.load %arg5[%c0_121, %347, %c0_122] : memref<2x8x32xf32, #tpu.memory_space<vmem>>, vector<2x1x32xf32>
    tpu.vector_store %arg5[%c0_121, %347, %c0_122], %346 {strides = array<i32>} : memref<2x8x32xf32, #tpu.memory_space<vmem>>, vector<2x1x32xf32>,
    %349 = vector.shape_cast %336 : vector<2x32xf32> to vector<2x1x32xf32>
    %c0_123 = arith.constant 0 : index
    %350 = arith.index_cast %c6_i32 : i32 to index
    %c0_124 = arith.constant 0 : index
    %351 = vector.load %arg6[%c0_123, %350, %c0_124] : memref<2x8x32xf32, #tpu.memory_space<vmem>>, vector<2x1x32xf32>
    tpu.vector_store %arg6[%c0_123, %350, %c0_124], %349 {strides = array<i32>} : memref<2x8x32xf32, #tpu.memory_space<vmem>>, vector<2x1x32xf32>,
    %c7_i32 = arith.constant 7 : i32
    %c0_125 = arith.constant 0 : index
    %c0_126 = arith.constant 0 : index
    %352 = arith.index_cast %c7_i32 : i32 to index
    %c0_127 = arith.constant 0 : index
    %353 = vector.load %arg2[%c0_125, %c0_126, %352, %c0_127] : memref<3x2x8x32xf32, #tpu.memory_space<vmem>>, vector<1x2x1x32xf32>
    %354 = vector.shape_cast %353 : vector<1x2x1x32xf32> to vector<2x1x32xf32>
    %355 = vector.shape_cast %354 : vector<2x1x32xf32> to vector<2x32xf32>
    %c1_128 = arith.constant 1 : index
    %c0_129 = arith.constant 0 : index
    %356 = arith.index_cast %c7_i32 : i32 to index
    %c0_130 = arith.constant 0 : index
    %357 = vector.load %arg2[%c1_128, %c0_129, %356, %c0_130] : memref<3x2x8x32xf32, #tpu.memory_space<vmem>>, vector<1x2x1x32xf32>
    %358 = vector.shape_cast %357 : vector<1x2x1x32xf32> to vector<2x1x32xf32>
    %359 = vector.shape_cast %358 : vector<2x1x32xf32> to vector<2x32xf32>
    %c2_131 = arith.constant 2 : index
    %c0_132 = arith.constant 0 : index
    %360 = arith.index_cast %c7_i32 : i32 to index
    %c0_133 = arith.constant 0 : index
    %361 = vector.load %arg2[%c2_131, %c0_132, %360, %c0_133] : memref<3x2x8x32xf32, #tpu.memory_space<vmem>>, vector<1x2x1x32xf32>
    %362 = vector.shape_cast %361 : vector<1x2x1x32xf32> to vector<2x1x32xf32>
    %363 = vector.shape_cast %362 : vector<2x1x32xf32> to vector<2x32xf32>
    %cst_134 = arith.constant dense<0.000000e+00> : vector<2x128xf32>
    %364 = tpu.matmul %345, %3, %cst_134 {dimension_numbers = #tpu.dot_dimension_numbers<[1], [0], [0], [1], [0, 0, 1, 1], [], []>} : vector<2x32xf32>, vector<32x128xf32>, vector<2x128xf32> -> vector<2x128xf32>
    %365 = vector.extract_strided_slice %364 {offsets = [0, 0], sizes = [2, 32], strides = [1, 1]} : vector<2x128xf32> to vector<2x32xf32>
    %366 = arith.addf %355, %365 : vector<2x32xf32>
    %367 = arith.negf %366 : vector<2x32xf32>
    %368 = math.exp %367 : vector<2x32xf32>
    %cst_135 = arith.constant 1.000000e+00 : f32
    %369 = vector.broadcast %cst_135 : f32 to vector<2x32xf32>
    %370 = arith.addf %369, %368 : vector<2x32xf32>
    %371 = arith.divf %369, %370 : vector<2x32xf32>
    %372 = vector.extract_strided_slice %364 {offsets = [0, 32], sizes = [2, 32], strides = [1, 1]} : vector<2x128xf32> to vector<2x32xf32>
    %373 = arith.addf %355, %372 : vector<2x32xf32>
    %374 = arith.addf %373, %6 : vector<2x32xf32>
    %375 = arith.negf %374 : vector<2x32xf32>
    %376 = math.exp %375 : vector<2x32xf32>
    %cst_136 = arith.constant 1.000000e+00 : f32
    %377 = vector.broadcast %cst_136 : f32 to vector<2x32xf32>
    %378 = arith.addf %377, %376 : vector<2x32xf32>
    %379 = arith.divf %377, %378 : vector<2x32xf32>
    %380 = arith.mulf %379, %336 : vector<2x32xf32>
    %381 = vector.extract_strided_slice %364 {offsets = [0, 64], sizes = [2, 32], strides = [1, 1]} : vector<2x128xf32> to vector<2x32xf32>
    %382 = arith.addf %359, %381 : vector<2x32xf32>
    %383 = math.tanh %382 : vector<2x32xf32>
    %384 = arith.mulf %371, %383 : vector<2x32xf32>
    %385 = arith.addf %380, %384 : vector<2x32xf32>
    %386 = vector.extract_strided_slice %364 {offsets = [0, 96], sizes = [2, 32], strides = [1, 1]} : vector<2x128xf32> to vector<2x32xf32>
    %387 = arith.addf %363, %386 : vector<2x32xf32>
    %388 = arith.negf %387 : vector<2x32xf32>
    %389 = math.exp %388 : vector<2x32xf32>
    %cst_137 = arith.constant 1.000000e+00 : f32
    %390 = vector.broadcast %cst_137 : f32 to vector<2x32xf32>
    %391 = arith.addf %390, %389 : vector<2x32xf32>
    %392 = arith.divf %390, %391 : vector<2x32xf32>
    %393 = math.tanh %385 : vector<2x32xf32>
    %394 = arith.mulf %392, %393 : vector<2x32xf32>
    %395 = vector.shape_cast %394 : vector<2x32xf32> to vector<2x1x32xf32>
    %c0_138 = arith.constant 0 : index
    %396 = arith.index_cast %c7_i32 : i32 to index
    %c0_139 = arith.constant 0 : index
    %397 = vector.load %arg5[%c0_138, %396, %c0_139] : memref<2x8x32xf32, #tpu.memory_space<vmem>>, vector<2x1x32xf32>
    tpu.vector_store %arg5[%c0_138, %396, %c0_139], %395 {strides = array<i32>} : memref<2x8x32xf32, #tpu.memory_space<vmem>>, vector<2x1x32xf32>,
    %398 = vector.shape_cast %385 : vector<2x32xf32> to vector<2x1x32xf32>
    %c0_140 = arith.constant 0 : index
    %399 = arith.index_cast %c7_i32 : i32 to index
    %c0_141 = arith.constant 0 : index
    %400 = vector.load %arg6[%c0_140, %399, %c0_141] : memref<2x8x32xf32, #tpu.memory_space<vmem>>, vector<2x1x32xf32>
    tpu.vector_store %arg6[%c0_140, %399, %c0_141], %398 {strides = array<i32>} : memref<2x8x32xf32, #tpu.memory_space<vmem>>, vector<2x1x32xf32>,
    %c8_i32 = arith.constant 8 : i32
    %c0_142 = arith.constant 0 : index
    %c0_143 = arith.constant 0 : index
    %401 = vector.load %arg7[%c0_142, %c0_143] : memref<2x32xf32, #tpu.memory_space<vmem>>, vector<2x32xf32>
    tpu.vector_store %arg7[%c0_142, %c0_143], %394 {strides = array<i32>} : memref<2x32xf32, #tpu.memory_space<vmem>>, vector<2x32xf32>,
    %c0_144 = arith.constant 0 : index
    %c0_145 = arith.constant 0 : index
    %402 = vector.load %arg8[%c0_144, %c0_145] : memref<2x32xf32, #tpu.memory_space<vmem>>, vector<2x32xf32>
    tpu.vector_store %arg8[%c0_144, %c0_145], %385 {strides = array<i32>} : memref<2x32xf32, #tpu.memory_space<vmem>>, vector<2x32xf32>,
    return
  }
  func.func @transform_0(%arg0: i32, %arg1: i32) -> (i32, i32, i32, i32) {
    %c0_i32 = arith.constant 0 : i32
    %c0_i32_0 = arith.constant 0 : i32
    %c0_i32_1 = arith.constant 0 : i32
    return %c0_i32, %arg0, %arg1, %c0_i32_0 : i32, i32, i32, i32
  }
  func.func @transform_1(%arg0: i32, %arg1: i32) -> (i32, i32) {
    %c0_i32 = arith.constant 0 : i32
    %c0_i32_0 = arith.constant 0 : i32
    %c0_i32_1 = arith.constant 0 : i32
    return %c0_i32, %c0_i32_0 : i32, i32
  }
  func.func @transform_2(%arg0: i32, %arg1: i32) -> (i32, i32) {
    %c0_i32 = arith.constant 0 : i32
    %c0_i32_0 = arith.constant 0 : i32
    %c0_i32_1 = arith.constant 0 : i32
    return %c0_i32, %c0_i32_0 : i32, i32
  }
  func.func @transform_3(%arg0: i32, %arg1: i32) -> (i32, i32, i32) {
    %c0_i32 = arith.constant 0 : i32
    %c0_i32_0 = arith.constant 0 : i32
    return %arg0, %arg1, %c0_i32 : i32, i32, i32
  }
  func.func @transform_4(%arg0: i32, %arg1: i32) -> (i32, i32, i32) {
    %c0_i32 = arith.constant 0 : i32
    %c0_i32_0 = arith.constant 0 : i32
    return %arg0, %arg1, %c0_i32 : i32, i32, i32
  }
}

</mosaic_0001>

<llo_original>
// kernel: lstm_forward.2
$region0: #{lstm_forward.2}
  #allocation0 [shape = 'u32[]', space=smem, size = 0x4, offset = 0x4, fixed_abs, tag = 'smem constant byte address 0x4 - core index']
  #allocation1 [shape = 'u32[144,128]{1,0:T(1,128)}', space=vmem, size = 0x12000, scoped, tag = 'internal scratch']
  %s0 = inlined_call_operand.vmem [shape: f32[16,32], index: 0, kind: input, shape index: {}]
  %s1 = inlined_call_operand.vmem [shape: f32[32,96], index: 1, kind: input, shape index: {}]
  %s2 = inlined_call_operand.vmem [shape: f32[1,96], index: 2, kind: input, shape index: {}]
  %s3 = inlined_call_operand.vmem [shape: f32[3,16,32], index: 3, kind: output, shape index: {}]
  %s4 = sld [smem:[#allocation0]]
  $region22: #{lstm_forward.2} parent=0
    _
  %s6 = ssub.s32 1, %s4
  %s7 = scalar_select 0, %s6, %s4
  // Predicated region
  $region2: #{lstm_forward.2} parent=0 // pred_check
    _
  $region3: #{lstm_forward.2} parent=0 // pred_check_branch
    %9 = sbr.rel (0) target = $region5
  $region4: #{lstm_forward.2} parent=0 // pred_region
    _
  $region5: #{lstm_forward.2} parent=0 // pred_fallthru
    _
  // Predicated region
  $region6: #{lstm_forward.2} parent=0 // pred_check
    _
  $region7: #{lstm_forward.2} parent=0 // pred_check_branch
    %11 = sbr.rel (0) target = $region9
  $region8: #{lstm_forward.2} parent=0 // pred_region
    _
  $region9: #{lstm_forward.2} parent=0 // pred_fallthru
    _
  // Predicated region
  $region10: #{lstm_forward.2} parent=0 // pred_check
    _
  $region11: #{lstm_forward.2} parent=0 // pred_check_branch
    %13 = sbr.rel (0) target = $region13
  $region12: #{lstm_forward.2} parent=0 // pred_region
    _
  $region13: #{lstm_forward.2} parent=0 // pred_fallthru
    _
  %v14 = vld [vmem:[%s0] sm:$0xff]
  %v15 = vld [vmem:[%s0 + $0x8] sm:$0xff]
  %v16 = vld [vmem:[%s1] sm:$0xff]
  %v17 = vld [vmem:[%s1 + $0x8] sm:$0xff]
  %v18 = vld [vmem:[%s1 + $0x10] sm:$0xff]
  %v19 = vld [vmem:[%s1 + $0x18] sm:$0xff]
  %v20 = vld [vmem:[%s2] sm:$0x1]
  %v22 = vlaneseq
  %v23 = vshrl.u32 %v22, 7
  %v24 = vsub.s32 0, %v23
  %v25 = vrot.slane %v20, %v24
  %vm27 = vcmask 261120
  %v29 = vsel %vm27, %v14, 0
  %v32 = vsel %vm27, %v15, 0
  %34 = vmatprep.subr.mxu0 0.0
  %35 = vmatpush1.msra.mxu0 %v16
  %36 = vmatprep.subr.mxu0 0.0
  %37 = vmatpush1.msra.mxu0 %v17
  %38 = vmatprep.subr.mxu0 0.0
  %39 = vmatpush1.msra.mxu0 %v18
  %40 = vmatprep.subr.mxu0 0.0
  %41 = vmatpush1.msra.mxu0 %v19
  %42 = vmatprep.subr.mxu0 0.0
  %43 = vmatpush1.msra.mxu0 0.0
  %44 = vmatprep.subr.mxu0 0.0
  %45 = vmatpush1.msra.mxu0 0.0
  %46 = vmatprep.subr.mxu0 0.0
  %47 = vmatpush1.msra.mxu0 0.0
  %48 = vmatprep.subr.mxu0 0.0
  %49 = vmatpush1.msra.mxu0 0.0
  %50 = vmatprep.subr.mxu0 0.0
  %51 = vmatpush1.msra.mxu0 0.0
  %52 = vmatprep.subr.mxu0 0.0
  %53 = vmatpush1.msra.mxu0 0.0
  %54 = vmatprep.subr.mxu0 0.0
  %55 = vmatpush1.msra.mxu0 0.0
  %56 = vmatprep.subr.mxu0 0.0
  %57 = vmatpush1.msra.mxu0 0.0
  %58 = vmatprep.subr.mxu0 0.0
  %59 = vmatpush1.msra.mxu0 0.0
  %60 = vmatprep.subr.mxu0 0.0
  %61 = vmatpush1.msra.mxu0 0.0
  %62 = vmatprep.subr.mxu0 0.0
  %63 = vmatpush1.msra.mxu0 0.0
  %64 = vmatprep.subr.mxu0 0.0
  %65 = vmatpush1.msra.mxu0 0.0
  %66 = vmatprep.subr.mxu0 0.0
  %67 = vmatpush1.msra.mxu0 0.0
  %68 = vmatprep.subr.mxu0 0.0
  %69 = vmatpush1.msra.mxu0 0.0
  %70 = vmatprep.subr.mxu0 0.0
  %71 = vmatpush1.msra.mxu0 0.0
  %72 = vmatprep.subr.mxu0 0.0
  %73 = vmatpush1.msra.mxu0 0.0
  %74 = vmatprep.subr.mxu0 0.0
  %75 = vmatpush1.msra.mxu0 0.0
  %76 = vmatprep.subr.mxu0 0.0
  %77 = vmatpush1.msra.mxu0 0.0
  %78 = vmatprep.subr.mxu0 0.0
  %79 = vmatpush1.msra.mxu0 0.0
  %80 = vmatprep.subr.mxu0 0.0
  %81 = vmatpush1.msra.mxu0 0.0
  %82 = vmatprep.subr.mxu0 0.0
  %83 = vmatpush1.msra.mxu0 0.0
  %84 = vmatprep.subr.mxu0 0.0
  %85 = vmatpush1.msra.mxu0 0.0
  %86 = vmatprep.subr.mxu0 0.0
  %87 = vmatpush1.msra.mxu0 0.0
  %88 = vmatprep.subr.mxu0 0.0
  %89 = vmatpush1.msra.mxu0 0.0
  %90 = vmatprep.subr.mxu0 0.0
  %91 = vmatpush1.msra.mxu0 0.0
  %92 = vmatprep.subr.mxu0 0.0
  %93 = vmatpush1.msra.mxu0 0.0
  %94 = vmatprep.subr.mxu0 0.0
  %95 = vmatpush1.msra.mxu0 0.0
  %96 = vmatprep.subr.mxu0 0.0
  %97 = vmatpush1.msra.mxu0 0.0
  %98 = vmatprep.mubr.f32.mxu0 0.0
  %99 = vmatmul.mubr.f32.gmra.mrb[0].mxu0 %v29
  %v100 = vpop.f32.mrb[0].mxu0
  %v101 = vadd.f32 %v25, %v100
  %v102 = vpop.f32.mrb[0].mxu0
  %103 = vmatprep.mubr.f32.mxu0 0.0
  %104 = vmatmul.mubr.f32.gmra.mrb[0].mxu0 %v32
  %v105 = vpop.f32.mrb[0].mxu0
  %v106 = vadd.f32 %v25, %v105
  %v107 = vpop.f32.mrb[0].mxu0
  %108 = vdwg.mxu0
  %109 = vst.msk [vmem:[%s3] sm:$0xff] %vm27, %v101
  %110 = vst.msk [vmem:[%s3 + $0x8] sm:$0xff] %vm27, %v106
  %113 = vrot.lane.b32.xlu0 %v101, 96
  %v114 = vpop.permute.xlu0 %113
  %115 = vrot.lane.b32.xlu0 %v106, 96
  %v116 = vpop.permute.xlu0 %115
  %s119 = scalar_lea.vmem %s3, 16
  %120 = vst.msk [vmem:[%s119] sm:$0xff] %vm27, %v114
  %121 = vst.msk [vmem:[%s119 + $0x8] sm:$0xff] %vm27, %v116
  %122 = vrot.lane.b32.xlu0 %v101, 64
  %v123 = vpop.permute.xlu0 %122
  %124 = vrot.lane.b32.xlu0 %v106, 64
  %v125 = vpop.permute.xlu0 %124
  %s128 = scalar_lea.vmem %s3, 32
  %129 = vst.msk [vmem:[%s128] sm:$0xff] %vm27, %v123
  %130 = vst.msk [vmem:[%s128 + $0x8] sm:$0xff] %vm27, %v125
  // Predicated region
  $region14: #{lstm_forward.2} parent=0 // pred_check
    _
  $region15: #{lstm_forward.2} parent=0 // pred_check_branch
    %132 = sbr.rel (0) target = $region17
  $region16: #{lstm_forward.2} parent=0 // pred_region
    _
  $region17: #{lstm_forward.2} parent=0 // pred_fallthru
    _
  // Predicated region
  $region18: #{lstm_forward.2} parent=0 // pred_check
    _
  $region19: #{lstm_forward.2} parent=0 // pred_check_branch
    %134 = sbr.rel (0) target = $region21
  $region20: #{lstm_forward.2} parent=0 // pred_region
    _
  $region21: #{lstm_forward.2} parent=0 // pred_fallthru
    _

// kernel: lstm_forward.3
$region0: #{lstm_forward.3}
  #allocation0 [shape = 'u32[]', space=smem, size = 0x4, offset = 0x4, fixed_abs, tag = 'smem constant byte address 0x4 - core index']
  #allocation1 [shape = 'u32[144,128]{1,0:T(1,128)}', space=vmem, size = 0x12000, scoped, tag = 'internal scratch']
  #allocation2 [shape = 'f32[2,32]{1,0:T(2,128)}', space=vmem, size = 0x400, scoped, tag = 'scratch operand']
  #allocation3 [shape = 'f32[2,32]{1,0:T(2,128)}', space=vmem, size = 0x400, scoped, tag = 'scratch operand']
  %s0 = inlined_call_operand.vmem [shape: f32[3,2,8,32], index: 0, kind: input, shape index: {}]
  %s1 = inlined_call_operand.vmem [shape: f32[32,128], index: 1, kind: input, shape index: {}]
  %s2 = inlined_call_operand.vmem [shape: f32[1,32], index: 2, kind: input, shape index: {}]
  %s3 = inlined_call_operand.hbm [shape: f32[2,8,32], index: 3, kind: output, shape index: {0}]
  %s4 = inlined_call_operand.hbm [shape: f32[2,8,32], index: 4, kind: output, shape index: {1}]
  %5 = xla_tuple %s3, %s4
  %s6 = sld [smem:[#allocation0]]
  $region34: #{lstm_forward.3} parent=0
    _
  %s8 = ssub.s32 1, %s6
  %s9 = scalar_select 0, %s8, %s6
  $region1: #{lstm_forward.3} parent=0
    #allocation4 [shape = 'u8[8192]{0}', space=vmem, size = 0x2000, scoped, tag = 'output window, operand 0, single buffered']
    #allocation5 [shape = 's32[1]{0}', space=sflag, size = 0x4, scoped, tag = 'scoped memory for lstm_forward.3']
    #allocation6 [shape = 'u8[8192]{0}', space=vmem, size = 0x2000, scoped, tag = 'output window, operand 1, single buffered']
    #allocation7 [shape = 's32[1]{0}', space=sflag, size = 0x4, scoped, tag = 'scoped memory for lstm_forward.3']
    %10 = vsyncpa [#allocation5], 0
    %11 = vsyncpa [#allocation7], 0
    // Predicated region
    $region2: #{lstm_forward.3} parent=1 // pred_check
      _
    $region3: #{lstm_forward.3} parent=1 // pred_check_branch
      %13 = sbr.rel (0) target = $region5
    $region4: #{lstm_forward.3} parent=1 // pred_region
      _
    $region5: #{lstm_forward.3} parent=1 // pred_fallthru
      _
    // Predicated region
    $region6: #{lstm_forward.3} parent=1 // pred_check
      _
    $region7: #{lstm_forward.3} parent=1 // pred_check_branch
      %15 = sbr.rel (0) target = $region9
    $region8: #{lstm_forward.3} parent=1 // pred_region
      _
    $region9: #{lstm_forward.3} parent=1 // pred_fallthru
      _
    // Predicated region
    $region10: #{lstm_forward.3} parent=1 // pred_check
      _
    $region11: #{lstm_forward.3} parent=1 // pred_check_branch
      %17 = sbr.rel (0) target = $region13
    $region12: #{lstm_forward.3} parent=1 // pred_region
      _
    $region13: #{lstm_forward.3} parent=1 // pred_fallthru
      _
    %p18 = scmp.eq.s32.totalorder 0, 0
    // Predicated region
    $region14: #{lstm_forward.3} parent=1 // pred_check
      %p19 = pneg %p18
    $region15: #{lstm_forward.3} parent=1 // pred_check_branch
      %21 = sbr.rel (%p19) target = $region17
    $region16: #{lstm_forward.3} parent=1 // pred_region
      %vm22 = vcmask 254976
      %23 = vst.msk [vmem:[#allocation2] sm:$0x3] %vm22, 0.0
      %24 = vst.msk [vmem:[#allocation3] sm:$0x3] %vm22, 0.0
    $region17: #{lstm_forward.3} parent=1 // pred_fallthru
      _
    %v25 = vld [vmem:[%s1] sm:$0xff]
    %v26 = vld [vmem:[%s1 + $0x8] sm:$0xff]
    %v27 = vld [vmem:[%s1 + $0x10] sm:$0xff]
    %v28 = vld [vmem:[%s1 + $0x18] sm:$0xff]
    %v29 = vld [vmem:[%s2] sm:$0x1]
    %v31 = vlaneseq
    %v32 = vshrl.u32 %v31, 7
    %v33 = vsub.s32 0, %v32
    %v34 = vrot.slane %v29, %v33
    %v36 = vld [vmem:[#allocation2] sm:$0x3]
    %v37 = vld [vmem:[#allocation3] sm:$0x3]
    %v38 = vld [vmem:[%s0] sm:$0x1]
    %v39 = vld [vmem:[%s0 + $0x8] sm:$0x1]
    %s40 = scalar_lea.vmem %s0, 16
    %v41 = vld [vmem:[%s40] sm:$0x1]
    %v42 = vld [vmem:[%s40 + $0x8] sm:$0x1]
    %s43 = scalar_lea.vmem %s0, 32
    %v44 = vld [vmem:[%s43] sm:$0x1]
    %v45 = vld [vmem:[%s43 + $0x8] sm:$0x1]
    %vm46 = vcmask 261120
    %v48 = vsel %vm46, %v36, 0
    %50 = vmatprep.subr.mxu0 0.0
    %51 = vmatpush1.msra.mxu0 %v25
    %52 = vmatprep.subr.mxu0 0.0
    %53 = vmatpush1.msra.mxu0 %v26
    %54 = vmatprep.subr.mxu0 0.0
    %55 = vmatpush1.msra.mxu0 %v27
    %56 = vmatprep.subr.mxu0 0.0
    %57 = vmatpush1.msra.mxu0 %v28
    %58 = vmatprep.subr.mxu0 0.0
    %59 = vmatpush1.msra.mxu0 0.0
    %60 = vmatprep.subr.mxu0 0.0
    %61 = vmatpush1.msra.mxu0 0.0
    %62 = vmatprep.subr.mxu0 0.0
    %63 = vmatpush1.msra.mxu0 0.0
    %64 = vmatprep.subr.mxu0 0.0
    %65 = vmatpush1.msra.mxu0 0.0
    %66 = vmatprep.subr.mxu0 0.0
    %67 = vmatpush1.msra.mxu0 0.0
    %68 = vmatprep.subr.mxu0 0.0
    %69 = vmatpush1.msra.mxu0 0.0
    %70 = vmatprep.subr.mxu0 0.0
    %71 = vmatpush1.msra.mxu0 0.0
    %72 = vmatprep.subr.mxu0 0.0
    %73 = vmatpush1.msra.mxu0 0.0
    %74 = vmatprep.subr.mxu0 0.0
    %75 = vmatpush1.msra.mxu0 0.0
    %76 = vmatprep.subr.mxu0 0.0
    %77 = vmatpush1.msra.mxu0 0.0
    %78 = vmatprep.subr.mxu0 0.0
    %79 = vmatpush1.msra.mxu0 0.0
    %80 = vmatprep.subr.mxu0 0.0
    %81 = vmatpush1.msra.mxu0 0.0
    %82 = vmatprep.subr.mxu0 0.0
    %83 = vmatpush1.msra.mxu0 0.0
    %84 = vmatprep.subr.mxu0 0.0
    %85 = vmatpush1.msra.mxu0 0.0
    %86 = vmatprep.subr.mxu0 0.0
    %87 = vmatpush1.msra.mxu0 0.0
    %88 = vmatprep.subr.mxu0 0.0
    %89 = vmatpush1.msra.mxu0 0.0
    %90 = vmatprep.subr.mxu0 0.0
    %91 = vmatpush1.msra.mxu0 0.0
    %92 = vmatprep.subr.mxu0 0.0
    %93 = vmatpush1.msra.mxu0 0.0
    %94 = vmatprep.subr.mxu0 0.0
    %95 = vmatpush1.msra.mxu0 0.0
    %96 = vmatprep.subr.mxu0 0.0
    %97 = vmatpush1.msra.mxu0 0.0
    %98 = vmatprep.subr.mxu0 0.0
    %99 = vmatpush1.msra.mxu0 0.0
    %100 = vmatprep.subr.mxu0 0.0
    %101 = vmatpush1.msra.mxu0 0.0
    %102 = vmatprep.subr.mxu0 0.0
    %103 = vmatpush1.msra.mxu0 0.0
    %104 = vmatprep.subr.mxu0 0.0
    %105 = vmatpush1.msra.mxu0 0.0
    %106 = vmatprep.subr.mxu0 0.0
    %107 = vmatpush1.msra.mxu0 0.0
    %108 = vmatprep.subr.mxu0 0.0
    %109 = vmatpush1.msra.mxu0 0.0
    %110 = vmatprep.subr.mxu0 0.0
    %111 = vmatpush1.msra.mxu0 0.0
    %112 = vmatprep.subr.mxu0 0.0
    %113 = vmatpush1.msra.mxu0 0.0
    %114 = vmatprep.mubr.f32.mxu0 0.0
    %115 = vmatmul.mubr.f32.gmra.mrb[0].mxu0 %v48
    %v116 = vpop.f32.mrb[0].mxu0
    %v117 = vadd.f32 0.0, %v116
    %v118 = vpop.f32.mrb[0].mxu0
    %119 = vdwg.mxu0
    %v121 = vrot.slane %v117, 1
    %v124 = vadd.f32 %v38, %v117
    %v125 = vadd.f32 %v39, %v121
    %v126 = vxor.u32 %v124, 2147483648
    %v127 = vxor.u32 %v125, 2147483648
    %v128 = vmul.f32 %v126, 1.442695
    %v129 = vpow.pop %v128
    %v130 = vmul.f32 %v127, 1.442695
    %v131 = vpow.pop %v130
    %v132 = vadd.f32 %v129, 1.0
    %v133 = vadd.f32 %v131, 1.0
    %v134 = vrcp.pop %v132
    %v135 = vmul.f32 1.0, %v134
    %v136 = vrcp.pop %v133
    %v137 = vmul.f32 1.0, %v136
    %138 = vrot.lane.b32.xlu0 %v117, 96
    %v139 = vpop.permute.xlu0 %138
    %140 = vrot.lane.b32.xlu0 %v121, 96
    %v141 = vpop.permute.xlu0 %140
    %v144 = vadd.f32 %v38, %v139
    %v145 = vadd.f32 %v39, %v141
    %v146 = vadd.f32 %v144, %v34
    %v147 = vadd.f32 %v145, %v34
    %v148 = vxor.u32 %v146, 2147483648
    %v149 = vxor.u32 %v147, 2147483648
    %v150 = vmul.f32 %v148, 1.442695
    %v151 = vpow.pop %v150
    %v152 = vmul.f32 %v149, 1.442695
    %v153 = vpow.pop %v152
    %v154 = vadd.f32 %v151, 1.0
    %v155 = vadd.f32 %v153, 1.0
    %v156 = vrcp.pop %v154
    %v157 = vmul.f32 1.0, %v156
    %v158 = vrcp.pop %v155
    %v159 = vmul.f32 1.0, %v158
    %v161 = vrot.slane %v37, 1
    %v164 = vmul.f32 %v157, %v37
    %v165 = vmul.f32 %v159, %v161
    %166 = vrot.lane.b32.xlu0 %v117, 64
    %v167 = vpop.permute.xlu0 %166
    %168 = vrot.lane.b32.xlu0 %v121, 64
    %v169 = vpop.permute.xlu0 %168
    %v172 = vadd.f32 %v41, %v167
    %v173 = vadd.f32 %v42, %v169
    %v174 = vtanh.pop %v172
    %v175 = vtanh.pop %v173
    %v176 = vmul.f32 %v135, %v174
    %v177 = vmul.f32 %v137, %v175
    %v178 = vadd.f32 %v164, %v176
    %v179 = vadd.f32 %v165, %v177
    %180 = vrot.lane.b32.xlu0 %v117, 32
    %v181 = vpop.permute.xlu0 %180
    %182 = vrot.lane.b32.xlu0 %v121, 32
    %v183 = vpop.permute.xlu0 %182
    %v186 = vadd.f32 %v44, %v181
    %v187 = vadd.f32 %v45, %v183
    %v188 = vxor.u32 %v186, 2147483648
    %v189 = vxor.u32 %v187, 2147483648
    %v190 = vmul.f32 %v188, 1.442695
    %v191 = vpow.pop %v190
    %v192 = vmul.f32 %v189, 1.442695
    %v193 = vpow.pop %v192
    %v194 = vadd.f32 %v191, 1.0
    %v195 = vadd.f32 %v193, 1.0
    %v196 = vrcp.pop %v194
    %v197 = vmul.f32 1.0, %v196
    %v198 = vrcp.pop %v195
    %v199 = vmul.f32 1.0, %v198
    %v200 = vtanh.pop %v178
    %v201 = vtanh.pop %v179
    %v202 = vmul.f32 %v197, %v200
    %v203 = vmul.f32 %v199, %v201
    %vm204 = vcmask 253952
    %205 = vst.msk [vmem:[#allocation4] sm:$0x1] %vm204, %v202
    %206 = vst.msk [vmem:[#allocation4 + $0x8] sm:$0x1] %vm204, %v203
    %207 = vst.msk [vmem:[#allocation6] sm:$0x1] %vm204, %v178
    %208 = vst.msk [vmem:[#allocation6 + $0x8] sm:$0x1] %vm204, %v179
    %v209 = vld [vmem:[%s0 + $0x1] sm:$0x1]
    %v210 = vld [vmem:[%s0 + $0x9] sm:$0x1]
    %v211 = vld [vmem:[%s40 + $0x1] sm:$0x1]
    %v212 = vld [vmem:[%s40 + $0x9] sm:$0x1]
    %v213 = vld [vmem:[%s43 + $0x1] sm:$0x1]
    %v214 = vld [vmem:[%s43 + $0x9] sm:$0x1]
    %v217 = vrot.slane %v203, 7
    %vm218 = vcmask 1041409
    %v219 = vsel %vm218, %v217, %v202
    %v220 = vsel %vm46, %v219, 0
    %222 = vmatprep.subr.mxu0 0.0
    %223 = vmatpush1.msra.mxu0 %v25
    %224 = vmatprep.subr.mxu0 0.0
    %225 = vmatpush1.msra.mxu0 %v26
    %226 = vmatprep.subr.mxu0 0.0
    %227 = vmatpush1.msra.mxu0 %v27
    %228 = vmatprep.subr.mxu0 0.0
    %229 = vmatpush1.msra.mxu0 %v28
    %230 = vmatprep.subr.mxu0 0.0
    %231 = vmatpush1.msra.mxu0 0.0
    %232 = vmatprep.subr.mxu0 0.0
    %233 = vmatpush1.msra.mxu0 0.0
    %234 = vmatprep.subr.mxu0 0.0
    %235 = vmatpush1.msra.mxu0 0.0
    %236 = vmatprep.subr.mxu0 0.0
    %237 = vmatpush1.msra.mxu0 0.0
    %238 = vmatprep.subr.mxu0 0.0
    %239 = vmatpush1.msra.mxu0 0.0
    %240 = vmatprep.subr.mxu0 0.0
    %241 = vmatpush1.msra.mxu0 0.0
    %242 = vmatprep.subr.mxu0 0.0
    %243 = vmatpush1.msra.mxu0 0.0
    %244 = vmatprep.subr.mxu0 0.0
    %245 = vmatpush1.msra.mxu0 0.0
    %246 = vmatprep.subr.mxu0 0.0
    %247 = vmatpush1.msra.mxu0 0.0
    %248 = vmatprep.subr.mxu0 0.0
    %249 = vmatpush1.msra.mxu0 0.0
    %250 = vmatprep.subr.mxu0 0.0
    %251 = vmatpush1.msra.mxu0 0.0
    %252 = vmatprep.subr.mxu0 0.0
    %253 = vmatpush1.msra.mxu0 0.0
    %254 = vmatprep.subr.mxu0 0.0
    %255 = vmatpush1.msra.mxu0 0.0
    %256 = vmatprep.subr.mxu0 0.0
    %257 = vmatpush1.msra.mxu0 0.0
    %258 = vmatprep.subr.mxu0 0.0
    %259 = vmatpush1.msra.mxu0 0.0
    %260 = vmatprep.subr.mxu0 0.0
    %261 = vmatpush1.msra.mxu0 0.0
    %262 = vmatprep.subr.mxu0 0.0
    %263 = vmatpush1.msra.mxu0 0.0
    %264 = vmatprep.subr.mxu0 0.0
    %265 = vmatpush1.msra.mxu0 0.0
    %266 = vmatprep.subr.mxu0 0.0
    %267 = vmatpush1.msra.mxu0 0.0
    %268 = vmatprep.subr.mxu0 0.0
    %269 = vmatpush1.msra.mxu0 0.0
    %270 = vmatprep.subr.mxu0 0.0
    %271 = vmatpush1.msra.mxu0 0.0
    %272 = vmatprep.subr.mxu0 0.0
    %273 = vmatpush1.msra.mxu0 0.0
    %274 = vmatprep.subr.mxu0 0.0
    %275 = vmatpush1.msra.mxu0 0.0
    %276 = vmatprep.subr.mxu0 0.0
    %277 = vmatpush1.msra.mxu0 0.0
    %278 = vmatprep.subr.mxu0 0.0
    %279 = vmatpush1.msra.mxu0 0.0
    %280 = vmatprep.subr.mxu0 0.0
    %281 = vmatpush1.msra.mxu0 0.0
    %282 = vmatprep.subr.mxu0 0.0
    %283 = vmatpush1.msra.mxu0 0.0
    %284 = vmatprep.subr.mxu0 0.0
    %285 = vmatpush1.msra.mxu0 0.0
    %286 = vmatprep.mubr.f32.mxu0 0.0
    %287 = vmatmul.mubr.f32.gmra.mrb[0].mxu0 %v220
    %v288 = vpop.f32.mrb[0].mxu0
    %v289 = vadd.f32 0.0, %v288
    %v290 = vpop.f32.mrb[0].mxu0
    %291 = vdwg.mxu0
    %v293 = vrot.slane %v289, 1
    %v296 = vadd.f32 %v209, %v289
    %v297 = vadd.f32 %v210, %v293
    %v298 = vxor.u32 %v296, 2147483648
    %v299 = vxor.u32 %v297, 2147483648
    %v300 = vmul.f32 %v298, 1.442695
    %v301 = vpow.pop %v300
    %v302 = vmul.f32 %v299, 1.442695
    %v303 = vpow.pop %v302
    %v304 = vadd.f32 %v301, 1.0
    %v305 = vadd.f32 %v303, 1.0
    %v306 = vrcp.pop %v304
    %v307 = vmul.f32 1.0, %v306
    %v308 = vrcp.pop %v305
    %v309 = vmul.f32 1.0, %v308
    %310 = vrot.lane.b32.xlu0 %v289, 96
    %v311 = vpop.permute.xlu0 %310
    %312 = vrot.lane.b32.xlu0 %v293, 96
    %v313 = vpop.permute.xlu0 %312
    %v316 = vadd.f32 %v209, %v311
    %v317 = vadd.f32 %v210, %v313
    %v318 = vadd.f32 %v316, %v34
    %v319 = vadd.f32 %v317, %v34
    %v320 = vxor.u32 %v318, 2147483648
    %v321 = vxor.u32 %v319, 2147483648
    %v322 = vmul.f32 %v320, 1.442695
    %v323 = vpow.pop %v322
    %v324 = vmul.f32 %v321, 1.442695
    %v325 = vpow.pop %v324
    %v326 = vadd.f32 %v323, 1.0
    %v327 = vadd.f32 %v325, 1.0
    %v328 = vrcp.pop %v326
    %v329 = vmul.f32 1.0, %v328
    %v330 = vrcp.pop %v327
    %v331 = vmul.f32 1.0, %v330
    %v332 = vmul.f32 %v329, %v178
    %v333 = vmul.f32 %v331, %v179
    %334 = vrot.lane.b32.xlu0 %v289, 64
    %v335 = vpop.permute.xlu0 %334
    %336 = vrot.lane.b32.xlu0 %v293, 64
    %v337 = vpop.permute.xlu0 %336
    %v340 = vadd.f32 %v211, %v335
    %v341 = vadd.f32 %v212, %v337
    %v342 = vtanh.pop %v340
    %v343 = vtanh.pop %v341
    %v344 = vmul.f32 %v307, %v342
    %v345 = vmul.f32 %v309, %v343
    %v346 = vadd.f32 %v332, %v344
    %v347 = vadd.f32 %v333, %v345
    %348 = vrot.lane.b32.xlu0 %v289, 32
    %v349 = vpop.permute.xlu0 %348
    %350 = vrot.lane.b32.xlu0 %v293, 32
    %v351 = vpop.permute.xlu0 %350
    %v354 = vadd.f32 %v213, %v349
    %v355 = vadd.f32 %v214, %v351
    %v356 = vxor.u32 %v354, 2147483648
    %v357 = vxor.u32 %v355, 2147483648
    %v358 = vmul.f32 %v356, 1.442695
    %v359 = vpow.pop %v358
    %v360 = vmul.f32 %v357, 1.442695
    %v361 = vpow.pop %v360
    %v362 = vadd.f32 %v359, 1.0
    %v363 = vadd.f32 %v361, 1.0
    %v364 = vrcp.pop %v362
    %v365 = vmul.f32 1.0, %v364
    %v366 = vrcp.pop %v363
    %v367 = vmul.f32 1.0, %v366
    %v368 = vtanh.pop %v346
    %v369 = vtanh.pop %v347
    %v370 = vmul.f32 %v365, %v368
    %v371 = vmul.f32 %v367, %v369
    %372 = vst.msk [vmem:[#allocation4 + $0x1] sm:$0x1] %vm204, %v370
    %373 = vst.msk [vmem:[#allocation4 + $0x9] sm:$0x1] %vm204, %v371
    %374 = vst.msk [vmem:[#allocation6 + $0x1] sm:$0x1] %vm204, %v346
    %375 = vst.msk [vmem:[#allocation6 + $0x9] sm:$0x1] %vm204, %v347
    %v376 = vld [vmem:[%s0 + $0x2] sm:$0x1]
    %v377 = vld [vmem:[%s0 + $0xa] sm:$0x1]
    %v378 = vld [vmem:[%s40 + $0x2] sm:$0x1]
    %v379 = vld [vmem:[%s40 + $0xa] sm:$0x1]
    %v380 = vld [vmem:[%s43 + $0x2] sm:$0x1]
    %v381 = vld [vmem:[%s43 + $0xa] sm:$0x1]
    %v384 = vrot.slane %v371, 7
    %v385 = vsel %vm218, %v384, %v370
    %v386 = vsel %vm46, %v385, 0
    %388 = vmatprep.subr.mxu0 0.0
    %389 = vmatpush1.msra.mxu0 %v25
    %390 = vmatprep.subr.mxu0 0.0
    %391 = vmatpush1.msra.mxu0 %v26
    %392 = vmatprep.subr.mxu0 0.0
    %393 = vmatpush1.msra.mxu0 %v27
    %394 = vmatprep.subr.mxu0 0.0
    %395 = vmatpush1.msra.mxu0 %v28
    %396 = vmatprep.subr.mxu0 0.0
    %397 = vmatpush1.msra.mxu0 0.0
    %398 = vmatprep.subr.mxu0 0.0
    %399 = vmatpush1.msra.mxu0 0.0
    %400 = vmatprep.subr.mxu0 0.0
    %401 = vmatpush1.msra.mxu0 0.0
    %402 = vmatprep.subr.mxu0 0.0
    %403 = vmatpush1.msra.mxu0 0.0
    %404 = vmatprep.subr.mxu0 0.0
    %405 = vmatpush1.msra.mxu0 0.0
    %406 = vmatprep.subr.mxu0 0.0
    %407 = vmatpush1.msra.mxu0 0.0
    %408 = vmatprep.subr.mxu0 0.0
    %409 = vmatpush1.msra.mxu0 0.0
    %410 = vmatprep.subr.mxu0 0.0
    %411 = vmatpush1.msra.mxu0 0.0
    %412 = vmatprep.subr.mxu0 0.0
    %413 = vmatpush1.msra.mxu0 0.0
    %414 = vmatprep.subr.mxu0 0.0
    %415 = vmatpush1.msra.mxu0 0.0
    %416 = vmatprep.subr.mxu0 0.0
    %417 = vmatpush1.msra.mxu0 0.0
    %418 = vmatprep.subr.mxu0 0.0
    %419 = vmatpush1.msra.mxu0 0.0
    %420 = vmatprep.subr.mxu0 0.0
    %421 = vmatpush1.msra.mxu0 0.0
    %422 = vmatprep.subr.mxu0 0.0
    %423 = vmatpush1.msra.mxu0 0.0
    %424 = vmatprep.subr.mxu0 0.0
    %425 = vmatpush1.msra.mxu0 0.0
    %426 = vmatprep.subr.mxu0 0.0
    %427 = vmatpush1.msra.mxu0 0.0
    %428 = vmatprep.subr.mxu0 0.0
    %429 = vmatpush1.msra.mxu0 0.0
    %430 = vmatprep.subr.mxu0 0.0
    %431 = vmatpush1.msra.mxu0 0.0
    %432 = vmatprep.subr.mxu0 0.0
    %433 = vmatpush1.msra.mxu0 0.0
    %434 = vmatprep.subr.mxu0 0.0
    %435 = vmatpush1.msra.mxu0 0.0
    %436 = vmatprep.subr.mxu0 0.0
    %437 = vmatpush1.msra.mxu0 0.0
    %438 = vmatprep.subr.mxu0 0.0
    %439 = vmatpush1.msra.mxu0 0.0
    %440 = vmatprep.subr.mxu0 0.0
    %441 = vmatpush1.msra.mxu0 0.0
    %442 = vmatprep.subr.mxu0 0.0
    %443 = vmatpush1.msra.mxu0 0.0
    %444 = vmatprep.subr.mxu0 0.0
    %445 = vmatpush1.msra.mxu0 0.0
    %446 = vmatprep.subr.mxu0 0.0
    %447 = vmatpush1.msra.mxu0 0.0
    %448 = vmatprep.subr.mxu0 0.0
    %449 = vmatpush1.msra.mxu0 0.0
    %450 = vmatprep.subr.mxu0 0.0
    %451 = vmatpush1.msra.mxu0 0.0
    %452 = vmatprep.mubr.f32.mxu0 0.0
    %453 = vmatmul.mubr.f32.gmra.mrb[0].mxu0 %v386
    %v454 = vpop.f32.mrb[0].mxu0
    %v455 = vadd.f32 0.0, %v454
    %v456 = vpop.f32.mrb[0].mxu0
    %457 = vdwg.mxu0
    %v459 = vrot.slane %v455, 1
    %v462 = vadd.f32 %v376, %v455
    %v463 = vadd.f32 %v377, %v459
    %v464 = vxor.u32 %v462, 2147483648
    %v465 = vxor.u32 %v463, 2147483648
    %v466 = vmul.f32 %v464, 1.442695
    %v467 = vpow.pop %v466
    %v468 = vmul.f32 %v465, 1.442695
    %v469 = vpow.pop %v468
    %v470 = vadd.f32 %v467, 1.0
    %v471 = vadd.f32 %v469, 1.0
    %v472 = vrcp.pop %v470
    %v473 = vmul.f32 1.0, %v472
    %v474 = vrcp.pop %v471
    %v475 = vmul.f32 1.0, %v474
    %476 = vrot.lane.b32.xlu0 %v455, 96
    %v477 = vpop.permute.xlu0 %476
    %478 = vrot.lane.b32.xlu0 %v459, 96
    %v479 = vpop.permute.xlu0 %478
    %v482 = vadd.f32 %v376, %v477
    %v483 = vadd.f32 %v377, %v479
    %v484 = vadd.f32 %v482, %v34
    %v485 = vadd.f32 %v483, %v34
    %v486 = vxor.u32 %v484, 2147483648
    %v487 = vxor.u32 %v485, 2147483648
    %v488 = vmul.f32 %v486, 1.442695
    %v489 = vpow.pop %v488
    %v490 = vmul.f32 %v487, 1.442695
    %v491 = vpow.pop %v490
    %v492 = vadd.f32 %v489, 1.0
    %v493 = vadd.f32 %v491, 1.0
    %v494 = vrcp.pop %v492
    %v495 = vmul.f32 1.0, %v494
    %v496 = vrcp.pop %v493
    %v497 = vmul.f32 1.0, %v496
    %v498 = vmul.f32 %v495, %v346
    %v499 = vmul.f32 %v497, %v347
    %500 = vrot.lane.b32.xlu0 %v455, 64
    %v501 = vpop.permute.xlu0 %500
    %502 = vrot.lane.b32.xlu0 %v459, 64
    %v503 = vpop.permute.xlu0 %502
    %v506 = vadd.f32 %v378, %v501
    %v507 = vadd.f32 %v379, %v503
    %v508 = vtanh.pop %v506
    %v509 = vtanh.pop %v507
    %v510 = vmul.f32 %v473, %v508
    %v511 = vmul.f32 %v475, %v509
    %v512 = vadd.f32 %v498, %v510
    %v513 = vadd.f32 %v499, %v511
    %514 = vrot.lane.b32.xlu0 %v455, 32
    %v515 = vpop.permute.xlu0 %514
    %516 = vrot.lane.b32.xlu0 %v459, 32
    %v517 = vpop.permute.xlu0 %516
    %v520 = vadd.f32 %v380, %v515
    %v521 = vadd.f32 %v381, %v517
    %v522 = vxor.u32 %v520, 2147483648
    %v523 = vxor.u32 %v521, 2147483648
    %v524 = vmul.f32 %v522, 1.442695
    %v525 = vpow.pop %v524
    %v526 = vmul.f32 %v523, 1.442695
    %v527 = vpow.pop %v526
    %v528 = vadd.f32 %v525, 1.0
    %v529 = vadd.f32 %v527, 1.0
    %v530 = vrcp.pop %v528
    %v531 = vmul.f32 1.0, %v530
    %v532 = vrcp.pop %v529
    %v533 = vmul.f32 1.0, %v532
    %v534 = vtanh.pop %v512
    %v535 = vtanh.pop %v513
    %v536 = vmul.f32 %v531, %v534
    %v537 = vmul.f32 %v533, %v535
    %538 = vst.msk [vmem:[#allocation4 + $0x2] sm:$0x1] %vm204, %v536
    %539 = vst.msk [vmem:[#allocation4 + $0xa] sm:$0x1] %vm204, %v537
    %540 = vst.msk [vmem:[#allocation6 + $0x2] sm:$0x1] %vm204, %v512
    %541 = vst.msk [vmem:[#allocation6 + $0xa] sm:$0x1] %vm204, %v513
    %v542 = vld [vmem:[%s0 + $0x3] sm:$0x1]
    %v543 = vld [vmem:[%s0 + $0xb] sm:$0x1]
    %v544 = vld [vmem:[%s40 + $0x3] sm:$0x1]
    %v545 = vld [vmem:[%s40 + $0xb] sm:$0x1]
    %v546 = vld [vmem:[%s43 + $0x3] sm:$0x1]
    %v547 = vld [vmem:[%s43 + $0xb] sm:$0x1]
    %v550 = vrot.slane %v537, 7
    %v551 = vsel %vm218, %v550, %v536
    %v552 = vsel %vm46, %v551, 0
    %554 = vmatprep.subr.mxu0 0.0
    %555 = vmatpush1.msra.mxu0 %v25
    %556 = vmatprep.subr.mxu0 0.0
    %557 = vmatpush1.msra.mxu0 %v26
    %558 = vmatprep.subr.mxu0 0.0
    %559 = vmatpush1.msra.mxu0 %v27
    %560 = vmatprep.subr.mxu0 0.0
    %561 = vmatpush1.msra.mxu0 %v28
    %562 = vmatprep.subr.mxu0 0.0
    %563 = vmatpush1.msra.mxu0 0.0
    %564 = vmatprep.subr.mxu0 0.0
    %565 = vmatpush1.msra.mxu0 0.0
    %566 = vmatprep.subr.mxu0 0.0
    %567 = vmatpush1.msra.mxu0 0.0
    %568 = vmatprep.subr.mxu0 0.0
    %569 = vmatpush1.msra.mxu0 0.0
    %570 = vmatprep.subr.mxu0 0.0
    %571 = vmatpush1.msra.mxu0 0.0
    %572 = vmatprep.subr.mxu0 0.0
    %573 = vmatpush1.msra.mxu0 0.0
    %574 = vmatprep.subr.mxu0 0.0
    %575 = vmatpush1.msra.mxu0 0.0
    %576 = vmatprep.subr.mxu0 0.0
    %577 = vmatpush1.msra.mxu0 0.0
    %578 = vmatprep.subr.mxu0 0.0
    %579 = vmatpush1.msra.mxu0 0.0
    %580 = vmatprep.subr.mxu0 0.0
    %581 = vmatpush1.msra.mxu0 0.0
    %582 = vmatprep.subr.mxu0 0.0
    %583 = vmatpush1.msra.mxu0 0.0
    %584 = vmatprep.subr.mxu0 0.0
    %585 = vmatpush1.msra.mxu0 0.0
    %586 = vmatprep.subr.mxu0 0.0
    %587 = vmatpush1.msra.mxu0 0.0
    %588 = vmatprep.subr.mxu0 0.0
    %589 = vmatpush1.msra.mxu0 0.0
    %590 = vmatprep.subr.mxu0 0.0
    %591 = vmatpush1.msra.mxu0 0.0
    %592 = vmatprep.subr.mxu0 0.0
    %593 = vmatpush1.msra.mxu0 0.0
    %594 = vmatprep.subr.mxu0 0.0
    %595 = vmatpush1.msra.mxu0 0.0
    %596 = vmatprep.subr.mxu0 0.0
    %597 = vmatpush1.msra.mxu0 0.0
    %598 = vmatprep.subr.mxu0 0.0
    %599 = vmatpush1.msra.mxu0 0.0
    %600 = vmatprep.subr.mxu0 0.0
    %601 = vmatpush1.msra.mxu0 0.0
    %602 = vmatprep.subr.mxu0 0.0
    %603 = vmatpush1.msra.mxu0 0.0
    %604 = vmatprep.subr.mxu0 0.0
    %605 = vmatpush1.msra.mxu0 0.0
    %606 = vmatprep.subr.mxu0 0.0
    %607 = vmatpush1.msra.mxu0 0.0
    %608 = vmatprep.subr.mxu0 0.0
    %609 = vmatpush1.msra.mxu0 0.0
    %610 = vmatprep.subr.mxu0 0.0
    %611 = vmatpush1.msra.mxu0 0.0
    %612 = vmatprep.subr.mxu0 0.0
    %613 = vmatpush1.msra.mxu0 0.0
    %614 = vmatprep.subr.mxu0 0.0
    %615 = vmatpush1.msra.mxu0 0.0
    %616 = vmatprep.subr.mxu0 0.0
    %617 = vmatpush1.msra.mxu0 0.0
    %618 = vmatprep.mubr.f32.mxu0 0.0
    %619 = vmatmul.mubr.f32.gmra.mrb[0].mxu0 %v552
    %v620 = vpop.f32.mrb[0].mxu0
    %v621 = vadd.f32 0.0, %v620
    %v622 = vpop.f32.mrb[0].mxu0
    %623 = vdwg.mxu0
    %v625 = vrot.slane %v621, 1
    %v628 = vadd.f32 %v542, %v621
    %v629 = vadd.f32 %v543, %v625
    %v630 = vxor.u32 %v628, 2147483648
    %v631 = vxor.u32 %v629, 2147483648
    %v632 = vmul.f32 %v630, 1.442695
    %v633 = vpow.pop %v632
    %v634 = vmul.f32 %v631, 1.442695
    %v635 = vpow.pop %v634
    %v636 = vadd.f32 %v633, 1.0
    %v637 = vadd.f32 %v635, 1.0
    %v638 = vrcp.pop %v636
    %v639 = vmul.f32 1.0, %v638
    %v640 = vrcp.pop %v637
    %v641 = vmul.f32 1.0, %v640
    %642 = vrot.lane.b32.xlu0 %v621, 96
    %v643 = vpop.permute.xlu0 %642
    %644 = vrot.lane.b32.xlu0 %v625, 96
    %v645 = vpop.permute.xlu0 %644
    %v648 = vadd.f32 %v542, %v643
    %v649 = vadd.f32 %v543, %v645
    %v650 = vadd.f32 %v648, %v34
    %v651 = vadd.f32 %v649, %v34
    %v652 = vxor.u32 %v650, 2147483648
    %v653 = vxor.u32 %v651, 2147483648
    %v654 = vmul.f32 %v652, 1.442695
    %v655 = vpow.pop %v654
    %v656 = vmul.f32 %v653, 1.442695
    %v657 = vpow.pop %v656
    %v658 = vadd.f32 %v655, 1.0
    %v659 = vadd.f32 %v657, 1.0
    %v660 = vrcp.pop %v658
    %v661 = vmul.f32 1.0, %v660
    %v662 = vrcp.pop %v659
    %v663 = vmul.f32 1.0, %v662
    %v664 = vmul.f32 %v661, %v512
    %v665 = vmul.f32 %v663, %v513
    %666 = vrot.lane.b32.xlu0 %v621, 64
    %v667 = vpop.permute.xlu0 %666
    %668 = vrot.lane.b32.xlu0 %v625, 64
    %v669 = vpop.permute.xlu0 %668
    %v672 = vadd.f32 %v544, %v667
    %v673 = vadd.f32 %v545, %v669
    %v674 = vtanh.pop %v672
    %v675 = vtanh.pop %v673
    %v676 = vmul.f32 %v639, %v674
    %v677 = vmul.f32 %v641, %v675
    %v678 = vadd.f32 %v664, %v676
    %v679 = vadd.f32 %v665, %v677
    %680 = vrot.lane.b32.xlu0 %v621, 32
    %v681 = vpop.permute.xlu0 %680
    %682 = vrot.lane.b32.xlu0 %v625, 32
    %v683 = vpop.permute.xlu0 %682
    %v686 = vadd.f32 %v546, %v681
    %v687 = vadd.f32 %v547, %v683
    %v688 = vxor.u32 %v686, 2147483648
    %v689 = vxor.u32 %v687, 2147483648
    %v690 = vmul.f32 %v688, 1.442695
    %v691 = vpow.pop %v690
    %v692 = vmul.f32 %v689, 1.442695
    %v693 = vpow.pop %v692
    %v694 = vadd.f32 %v691, 1.0
    %v695 = vadd.f32 %v693, 1.0
    %v696 = vrcp.pop %v694
    %v697 = vmul.f32 1.0, %v696
    %v698 = vrcp.pop %v695
    %v699 = vmul.f32 1.0, %v698
    %v700 = vtanh.pop %v678
    %v701 = vtanh.pop %v679
    %v702 = vmul.f32 %v697, %v700
    %v703 = vmul.f32 %v699, %v701
    %704 = vst.msk [vmem:[#allocation4 + $0x3] sm:$0x1] %vm204, %v702
    %705 = vst.msk [vmem:[#allocation4 + $0xb] sm:$0x1] %vm204, %v703
    %706 = vst.msk [vmem:[#allocation6 + $0x3] sm:$0x1] %vm204, %v678
    %707 = vst.msk [vmem:[#allocation6 + $0xb] sm:$0x1] %vm204, %v679
    %v708 = vld [vmem:[%s0 + $0x4] sm:$0x1]
    %v709 = vld [vmem:[%s0 + $0xc] sm:$0x1]
    %v710 = vld [vmem:[%s40 + $0x4] sm:$0x1]
    %v711 = vld [vmem:[%s40 + $0xc] sm:$0x1]
    %v712 = vld [vmem:[%s43 + $0x4] sm:$0x1]
    %v713 = vld [vmem:[%s43 + $0xc] sm:$0x1]
    %v716 = vrot.slane %v703, 7
    %v717 = vsel %vm218, %v716, %v702
    %v718 = vsel %vm46, %v717, 0
    %720 = vmatprep.subr.mxu0 0.0
    %721 = vmatpush1.msra.mxu0 %v25
    %722 = vmatprep.subr.mxu0 0.0
    %723 = vmatpush1.msra.mxu0 %v26
    %724 = vmatprep.subr.mxu0 0.0
    %725 = vmatpush1.msra.mxu0 %v27
    %726 = vmatprep.subr.mxu0 0.0
    %727 = vmatpush1.msra.mxu0 %v28
    %728 = vmatprep.subr.mxu0 0.0
    %729 = vmatpush1.msra.mxu0 0.0
    %730 = vmatprep.subr.mxu0 0.0
    %731 = vmatpush1.msra.mxu0 0.0
    %732 = vmatprep.subr.mxu0 0.0
    %733 = vmatpush1.msra.mxu0 0.0
    %734 = vmatprep.subr.mxu0 0.0
    %735 = vmatpush1.msra.mxu0 0.0
    %736 = vmatprep.subr.mxu0 0.0
    %737 = vmatpush1.msra.mxu0 0.0
    %738 = vmatprep.subr.mxu0 0.0
    %739 = vmatpush1.msra.mxu0 0.0
    %740 = vmatprep.subr.mxu0 0.0
    %741 = vmatpush1.msra.mxu0 0.0
    %742 = vmatprep.subr.mxu0 0.0
    %743 = vmatpush1.msra.mxu0 0.0
    %744 = vmatprep.subr.mxu0 0.0
    %745 = vmatpush1.msra.mxu0 0.0
    %746 = vmatprep.subr.mxu0 0.0
    %747 = vmatpush1.msra.mxu0 0.0
    %748 = vmatprep.subr.mxu0 0.0
    %749 = vmatpush1.msra.mxu0 0.0
    %750 = vmatprep.subr.mxu0 0.0
    %751 = vmatpush1.msra.mxu0 0.0
    %752 = vmatprep.subr.mxu0 0.0
    %753 = vmatpush1.msra.mxu0 0.0
    %754 = vmatprep.subr.mxu0 0.0
    %755 = vmatpush1.msra.mxu0 0.0
    %756 = vmatprep.subr.mxu0 0.0
    %757 = vmatpush1.msra.mxu0 0.0
    %758 = vmatprep.subr.mxu0 0.0
    %759 = vmatpush1.msra.mxu0 0.0
    %760 = vmatprep.subr.mxu0 0.0
    %761 = vmatpush1.msra.mxu0 0.0
    %762 = vmatprep.subr.mxu0 0.0
    %763 = vmatpush1.msra.mxu0 0.0
    %764 = vmatprep.subr.mxu0 0.0
    %765 = vmatpush1.msra.mxu0 0.0
    %766 = vmatprep.subr.mxu0 0.0
    %767 = vmatpush1.msra.mxu0 0.0
    %768 = vmatprep.subr.mxu0 0.0
    %769 = vmatpush1.msra.mxu0 0.0
    %770 = vmatprep.subr.mxu0 0.0
    %771 = vmatpush1.msra.mxu0 0.0
    %772 = vmatprep.subr.mxu0 0.0
    %773 = vmatpush1.msra.mxu0 0.0
    %774 = vmatprep.subr.mxu0 0.0
    %775 = vmatpush1.msra.mxu0 0.0
    %776 = vmatprep.subr.mxu0 0.0
    %777 = vmatpush1.msra.mxu0 0.0
    %778 = vmatprep.subr.mxu0 0.0
    %779 = vmatpush1.msra.mxu0 0.0
    %780 = vmatprep.subr.mxu0 0.0
    %781 = vmatpush1.msra.mxu0 0.0
    %782 = vmatprep.subr.mxu0 0.0
    %783 = vmatpush1.msra.mxu0 0.0
    %784 = vmatprep.mubr.f32.mxu0 0.0
    %785 = vmatmul.mubr.f32.gmra.mrb[0].mxu0 %v718
    %v786 = vpop.f32.mrb[0].mxu0
    %v787 = vadd.f32 0.0, %v786
    %v788 = vpop.f32.mrb[0].mxu0
    %789 = vdwg.mxu0
    %v791 = vrot.slane %v787, 1
    %v794 = vadd.f32 %v708, %v787
    %v795 = vadd.f32 %v709, %v791
    %v796 = vxor.u32 %v794, 2147483648
    %v797 = vxor.u32 %v795, 2147483648
    %v798 = vmul.f32 %v796, 1.442695
    %v799 = vpow.pop %v798
    %v800 = vmul.f32 %v797, 1.442695
    %v801 = vpow.pop %v800
    %v802 = vadd.f32 %v799, 1.0
    %v803 = vadd.f32 %v801, 1.0
    %v804 = vrcp.pop %v802
    %v805 = vmul.f32 1.0, %v804
    %v806 = vrcp.pop %v803
    %v807 = vmul.f32 1.0, %v806
    %808 = vrot.lane.b32.xlu0 %v787, 96
    %v809 = vpop.permute.xlu0 %808
    %810 = vrot.lane.b32.xlu0 %v791, 96
    %v811 = vpop.permute.xlu0 %810
    %v814 = vadd.f32 %v708, %v809
    %v815 = vadd.f32 %v709, %v811
    %v816 = vadd.f32 %v814, %v34
    %v817 = vadd.f32 %v815, %v34
    %v818 = vxor.u32 %v816, 2147483648
    %v819 = vxor.u32 %v817, 2147483648
    %v820 = vmul.f32 %v818, 1.442695
    %v821 = vpow.pop %v820
    %v822 = vmul.f32 %v819, 1.442695
    %v823 = vpow.pop %v822
    %v824 = vadd.f32 %v821, 1.0
    %v825 = vadd.f32 %v823, 1.0
    %v826 = vrcp.pop %v824
    %v827 = vmul.f32 1.0, %v826
    %v828 = vrcp.pop %v825
    %v829 = vmul.f32 1.0, %v828
    %v830 = vmul.f32 %v827, %v678
    %v831 = vmul.f32 %v829, %v679
    %832 = vrot.lane.b32.xlu0 %v787, 64
    %v833 = vpop.permute.xlu0 %832
    %834 = vrot.lane.b32.xlu0 %v791, 64
    %v835 = vpop.permute.xlu0 %834
    %v838 = vadd.f32 %v710, %v833
    %v839 = vadd.f32 %v711, %v835
    %v840 = vtanh.pop %v838
    %v841 = vtanh.pop %v839
    %v842 = vmul.f32 %v805, %v840
    %v843 = vmul.f32 %v807, %v841
    %v844 = vadd.f32 %v830, %v842
    %v845 = vadd.f32 %v831, %v843
    %846 = vrot.lane.b32.xlu0 %v787, 32
    %v847 = vpop.permute.xlu0 %846
    %848 = vrot.lane.b32.xlu0 %v791, 32
    %v849 = vpop.permute.xlu0 %848
    %v852 = vadd.f32 %v712, %v847
    %v853 = vadd.f32 %v713, %v849
    %v854 = vxor.u32 %v852, 2147483648
    %v855 = vxor.u32 %v853, 2147483648
    %v856 = vmul.f32 %v854, 1.442695
    %v857 = vpow.pop %v856
    %v858 = vmul.f32 %v855, 1.442695
    %v859 = vpow.pop %v858
    %v860 = vadd.f32 %v857, 1.0
    %v861 = vadd.f32 %v859, 1.0
    %v862 = vrcp.pop %v860
    %v863 = vmul.f32 1.0, %v862
    %v864 = vrcp.pop %v861
    %v865 = vmul.f32 1.0, %v864
    %v866 = vtanh.pop %v844
    %v867 = vtanh.pop %v845
    %v868 = vmul.f32 %v863, %v866
    %v869 = vmul.f32 %v865, %v867
    %870 = vst.msk [vmem:[#allocation4 + $0x4] sm:$0x1] %vm204, %v868
    %871 = vst.msk [vmem:[#allocation4 + $0xc] sm:$0x1] %vm204, %v869
    %872 = vst.msk [vmem:[#allocation6 + $0x4] sm:$0x1] %vm204, %v844
    %873 = vst.msk [vmem:[#allocation6 + $0xc] sm:$0x1] %vm204, %v845
    %v874 = vld [vmem:[%s0 + $0x5] sm:$0x1]
    %v875 = vld [vmem:[%s0 + $0xd] sm:$0x1]
    %v876 = vld [vmem:[%s40 + $0x5] sm:$0x1]
    %v877 = vld [vmem:[%s40 + $0xd] sm:$0x1]
    %v878 = vld [vmem:[%s43 + $0x5] sm:$0x1]
    %v879 = vld [vmem:[%s43 + $0xd] sm:$0x1]
    %v882 = vrot.slane %v869, 7
    %v883 = vsel %vm218, %v882, %v868
    %v884 = vsel %vm46, %v883, 0
    %886 = vmatprep.subr.mxu0 0.0
    %887 = vmatpush1.msra.mxu0 %v25
    %888 = vmatprep.subr.mxu0 0.0
    %889 = vmatpush1.msra.mxu0 %v26
    %890 = vmatprep.subr.mxu0 0.0
    %891 = vmatpush1.msra.mxu0 %v27
    %892 = vmatprep.subr.mxu0 0.0
    %893 = vmatpush1.msra.mxu0 %v28
    %894 = vmatprep.subr.mxu0 0.0
    %895 = vmatpush1.msra.mxu0 0.0
    %896 = vmatprep.subr.mxu0 0.0
    %897 = vmatpush1.msra.mxu0 0.0
    %898 = vmatprep.subr.mxu0 0.0
    %899 = vmatpush1.msra.mxu0 0.0
    %900 = vmatprep.subr.mxu0 0.0
    %901 = vmatpush1.msra.mxu0 0.0
    %902 = vmatprep.subr.mxu0 0.0
    %903 = vmatpush1.msra.mxu0 0.0
    %904 = vmatprep.subr.mxu0 0.0
    %905 = vmatpush1.msra.mxu0 0.0
    %906 = vmatprep.subr.mxu0 0.0
    %907 = vmatpush1.msra.mxu0 0.0
    %908 = vmatprep.subr.mxu0 0.0
    %909 = vmatpush1.msra.mxu0 0.0
    %910 = vmatprep.subr.mxu0 0.0
    %911 = vmatpush1.msra.mxu0 0.0
    %912 = vmatprep.subr.mxu0 0.0
    %913 = vmatpush1.msra.mxu0 0.0
    %914 = vmatprep.subr.mxu0 0.0
    %915 = vmatpush1.msra.mxu0 0.0
    %916 = vmatprep.subr.mxu0 0.0
    %917 = vmatpush1.msra.mxu0 0.0
    %918 = vmatprep.subr.mxu0 0.0
    %919 = vmatpush1.msra.mxu0 0.0
    %920 = vmatprep.subr.mxu0 0.0
    %921 = vmatpush1.msra.mxu0 0.0
    %922 = vmatprep.subr.mxu0 0.0
    %923 = vmatpush1.msra.mxu0 0.0
    %924 = vmatprep.subr.mxu0 0.0
    %925 = vmatpush1.msra.mxu0 0.0
    %926 = vmatprep.subr.mxu0 0.0
    %927 = vmatpush1.msra.mxu0 0.0
    %928 = vmatprep.subr.mxu0 0.0
    %929 = vmatpush1.msra.mxu0 0.0
    %930 = vmatprep.subr.mxu0 0.0
    %931 = vmatpush1.msra.mxu0 0.0
    %932 = vmatprep.subr.mxu0 0.0
    %933 = vmatpush1.msra.mxu0 0.0
    %934 = vmatprep.subr.mxu0 0.0
    %935 = vmatpush1.msra.mxu0 0.0
    %936 = vmatprep.subr.mxu0 0.0
    %937 = vmatpush1.msra.mxu0 0.0
    %938 = vmatprep.subr.mxu0 0.0
    %939 = vmatpush1.msra.mxu0 0.0
    %940 = vmatprep.subr.mxu0 0.0
    %941 = vmatpush1.msra.mxu0 0.0
    %942 = vmatprep.subr.mxu0 0.0
    %943 = vmatpush1.msra.mxu0 0.0
    %944 = vmatprep.subr.mxu0 0.0
    %945 = vmatpush1.msra.mxu0 0.0
    %946 = vmatprep.subr.mxu0 0.0
    %947 = vmatpush1.msra.mxu0 0.0
    %948 = vmatprep.subr.mxu0 0.0
    %949 = vmatpush1.msra.mxu0 0.0
    %950 = vmatprep.mubr.f32.mxu0 0.0
    %951 = vmatmul.mubr.f32.gmra.mrb[0].mxu0 %v884
    %v952 = vpop.f32.mrb[0].mxu0
    %v953 = vadd.f32 0.0, %v952
    %v954 = vpop.f32.mrb[0].mxu0
    %955 = vdwg.mxu0
    %v957 = vrot.slane %v953, 1
    %v960 = vadd.f32 %v874, %v953
    %v961 = vadd.f32 %v875, %v957
    %v962 = vxor.u32 %v960, 2147483648
    %v963 = vxor.u32 %v961, 2147483648
    %v964 = vmul.f32 %v962, 1.442695
    %v965 = vpow.pop %v964
    %v966 = vmul.f32 %v963, 1.442695
    %v967 = vpow.pop %v966
    %v968 = vadd.f32 %v965, 1.0
    %v969 = vadd.f32 %v967, 1.0
    %v970 = vrcp.pop %v968
    %v971 = vmul.f32 1.0, %v970
    %v972 = vrcp.pop %v969
    %v973 = vmul.f32 1.0, %v972
    %974 = vrot.lane.b32.xlu0 %v953, 96
    %v975 = vpop.permute.xlu0 %974
    %976 = vrot.lane.b32.xlu0 %v957, 96
    %v977 = vpop.permute.xlu0 %976
    %v980 = vadd.f32 %v874, %v975
    %v981 = vadd.f32 %v875, %v977
    %v982 = vadd.f32 %v980, %v34
    %v983 = vadd.f32 %v981, %v34
    %v984 = vxor.u32 %v982, 2147483648
    %v985 = vxor.u32 %v983, 2147483648
    %v986 = vmul.f32 %v984, 1.442695
    %v987 = vpow.pop %v986
    %v988 = vmul.f32 %v985, 1.442695
    %v989 = vpow.pop %v988
    %v990 = vadd.f32 %v987, 1.0
    %v991 = vadd.f32 %v989, 1.0
    %v992 = vrcp.pop %v990
    %v993 = vmul.f32 1.0, %v992
    %v994 = vrcp.pop %v991
    %v995 = vmul.f32 1.0, %v994
    %v996 = vmul.f32 %v993, %v844
    %v997 = vmul.f32 %v995, %v845
    %998 = vrot.lane.b32.xlu0 %v953, 64
    %v999 = vpop.permute.xlu0 %998
    %1000 = vrot.lane.b32.xlu0 %v957, 64
    %v1001 = vpop.permute.xlu0 %1000
    %v1004 = vadd.f32 %v876, %v999
    %v1005 = vadd.f32 %v877, %v1001
    %v1006 = vtanh.pop %v1004
    %v1007 = vtanh.pop %v1005
    %v1008 = vmul.f32 %v971, %v1006
    %v1009 = vmul.f32 %v973, %v1007
    %v1010 = vadd.f32 %v996, %v1008
    %v1011 = vadd.f32 %v997, %v1009
    %1012 = vrot.lane.b32.xlu0 %v953, 32
    %v1013 = vpop.permute.xlu0 %1012
    %1014 = vrot.lane.b32.xlu0 %v957, 32
    %v1015 = vpop.permute.xlu0 %1014
    %v1018 = vadd.f32 %v878, %v1013
    %v1019 = vadd.f32 %v879, %v1015
    %v1020 = vxor.u32 %v1018, 2147483648
    %v1021 = vxor.u32 %v1019, 2147483648
    %v1022 = vmul.f32 %v1020, 1.442695
    %v1023 = vpow.pop %v1022
    %v1024 = vmul.f32 %v1021, 1.442695
    %v1025 = vpow.pop %v1024
    %v1026 = vadd.f32 %v1023, 1.0
    %v1027 = vadd.f32 %v1025, 1.0
    %v1028 = vrcp.pop %v1026
    %v1029 = vmul.f32 1.0, %v1028
    %v1030 = vrcp.pop %v1027
    %v1031 = vmul.f32 1.0, %v1030
    %v1032 = vtanh.pop %v1010
    %v1033 = vtanh.pop %v1011
    %v1034 = vmul.f32 %v1029, %v1032
    %v1035 = vmul.f32 %v1031, %v1033
    %1036 = vst.msk [vmem:[#allocation4 + $0x5] sm:$0x1] %vm204, %v1034
    %1037 = vst.msk [vmem:[#allocation4 + $0xd] sm:$0x1] %vm204, %v1035
    %1038 = vst.msk [vmem:[#allocation6 + $0x5] sm:$0x1] %vm204, %v1010
    %1039 = vst.msk [vmem:[#allocation6 + $0xd] sm:$0x1] %vm204, %v1011
    %v1040 = vld [vmem:[%s0 + $0x6] sm:$0x1]
    %v1041 = vld [vmem:[%s0 + $0xe] sm:$0x1]
    %v1042 = vld [vmem:[%s40 + $0x6] sm:$0x1]
    %v1043 = vld [vmem:[%s40 + $0xe] sm:$0x1]
    %v1044 = vld [vmem:[%s43 + $0x6] sm:$0x1]
    %v1045 = vld [vmem:[%s43 + $0xe] sm:$0x1]
    %v1048 = vrot.slane %v1035, 7
    %v1049 = vsel %vm218, %v1048, %v1034
    %v1050 = vsel %vm46, %v1049, 0
    %1052 = vmatprep.subr.mxu0 0.0
    %1053 = vmatpush1.msra.mxu0 %v25
    %1054 = vmatprep.subr.mxu0 0.0
    %1055 = vmatpush1.msra.mxu0 %v26
    %1056 = vmatprep.subr.mxu0 0.0
    %1057 = vmatpush1.msra.mxu0 %v27
    %1058 = vmatprep.subr.mxu0 0.0
    %1059 = vmatpush1.msra.mxu0 %v28
    %1060 = vmatprep.subr.mxu0 0.0
    %1061 = vmatpush1.msra.mxu0 0.0
    %1062 = vmatprep.subr.mxu0 0.0
    %1063 = vmatpush1.msra.mxu0 0.0
    %1064 = vmatprep.subr.mxu0 0.0
    %1065 = vmatpush1.msra.mxu0 0.0
    %1066 = vmatprep.subr.mxu0 0.0
    %1067 = vmatpush1.msra.mxu0 0.0
    %1068 = vmatprep.subr.mxu0 0.0
    %1069 = vmatpush1.msra.mxu0 0.0
    %1070 = vmatprep.subr.mxu0 0.0
    %1071 = vmatpush1.msra.mxu0 0.0
    %1072 = vmatprep.subr.mxu0 0.0
    %1073 = vmatpush1.msra.mxu0 0.0
    %1074 = vmatprep.subr.mxu0 0.0
    %1075 = vmatpush1.msra.mxu0 0.0
    %1076 = vmatprep.subr.mxu0 0.0
    %1077 = vmatpush1.msra.mxu0 0.0
    %1078 = vmatprep.subr.mxu0 0.0
    %1079 = vmatpush1.msra.mxu0 0.0
    %1080 = vmatprep.subr.mxu0 0.0
    %1081 = vmatpush1.msra.mxu0 0.0
    %1082 = vmatprep.subr.mxu0 0.0
    %1083 = vmatpush1.msra.mxu0 0.0
    %1084 = vmatprep.subr.mxu0 0.0
    %1085 = vmatpush1.msra.mxu0 0.0
    %1086 = vmatprep.subr.mxu0 0.0
    %1087 = vmatpush1.msra.mxu0 0.0
    %1088 = vmatprep.subr.mxu0 0.0
    %1089 = vmatpush1.msra.mxu0 0.0
    %1090 = vmatprep.subr.mxu0 0.0
    %1091 = vmatpush1.msra.mxu0 0.0
    %1092 = vmatprep.subr.mxu0 0.0
    %1093 = vmatpush1.msra.mxu0 0.0
    %1094 = vmatprep.subr.mxu0 0.0
    %1095 = vmatpush1.msra.mxu0 0.0
    %1096 = vmatprep.subr.mxu0 0.0
    %1097 = vmatpush1.msra.mxu0 0.0
    %1098 = vmatprep.subr.mxu0 0.0
    %1099 = vmatpush1.msra.mxu0 0.0
    %1100 = vmatprep.subr.mxu0 0.0
    %1101 = vmatpush1.msra.mxu0 0.0
    %1102 = vmatprep.subr.mxu0 0.0
    %1103 = vmatpush1.msra.mxu0 0.0
    %1104 = vmatprep.subr.mxu0 0.0
    %1105 = vmatpush1.msra.mxu0 0.0
    %1106 = vmatprep.subr.mxu0 0.0
    %1107 = vmatpush1.msra.mxu0 0.0
    %1108 = vmatprep.subr.mxu0 0.0
    %1109 = vmatpush1.msra.mxu0 0.0
    %1110 = vmatprep.subr.mxu0 0.0
    %1111 = vmatpush1.msra.mxu0 0.0
    %1112 = vmatprep.subr.mxu0 0.0
    %1113 = vmatpush1.msra.mxu0 0.0
    %1114 = vmatprep.subr.mxu0 0.0
    %1115 = vmatpush1.msra.mxu0 0.0
    %1116 = vmatprep.mubr.f32.mxu0 0.0
    %1117 = vmatmul.mubr.f32.gmra.mrb[0].mxu0 %v1050
    %v1118 = vpop.f32.mrb[0].mxu0
    %v1119 = vadd.f32 0.0, %v1118
    %v1120 = vpop.f32.mrb[0].mxu0
    %1121 = vdwg.mxu0
    %v1123 = vrot.slane %v1119, 1
    %v1126 = vadd.f32 %v1040, %v1119
    %v1127 = vadd.f32 %v1041, %v1123
    %v1128 = vxor.u32 %v1126, 2147483648
    %v1129 = vxor.u32 %v1127, 2147483648
    %v1130 = vmul.f32 %v1128, 1.442695
    %v1131 = vpow.pop %v1130
    %v1132 = vmul.f32 %v1129, 1.442695
    %v1133 = vpow.pop %v1132
    %v1134 = vadd.f32 %v1131, 1.0
    %v1135 = vadd.f32 %v1133, 1.0
    %v1136 = vrcp.pop %v1134
    %v1137 = vmul.f32 1.0, %v1136
    %v1138 = vrcp.pop %v1135
    %v1139 = vmul.f32 1.0, %v1138
    %1140 = vrot.lane.b32.xlu0 %v1119, 96
    %v1141 = vpop.permute.xlu0 %1140
    %1142 = vrot.lane.b32.xlu0 %v1123, 96
    %v1143 = vpop.permute.xlu0 %1142
    %v1146 = vadd.f32 %v1040, %v1141
    %v1147 = vadd.f32 %v1041, %v1143
    %v1148 = vadd.f32 %v1146, %v34
    %v1149 = vadd.f32 %v1147, %v34
    %v1150 = vxor.u32 %v1148, 2147483648
    %v1151 = vxor.u32 %v1149, 2147483648
    %v1152 = vmul.f32 %v1150, 1.442695
    %v1153 = vpow.pop %v1152
    %v1154 = vmul.f32 %v1151, 1.442695
    %v1155 = vpow.pop %v1154
    %v1156 = vadd.f32 %v1153, 1.0
    %v1157 = vadd.f32 %v1155, 1.0
    %v1158 = vrcp.pop %v1156
    %v1159 = vmul.f32 1.0, %v1158
    %v1160 = vrcp.pop %v1157
    %v1161 = vmul.f32 1.0, %v1160
    %v1162 = vmul.f32 %v1159, %v1010
    %v1163 = vmul.f32 %v1161, %v1011
    %1164 = vrot.lane.b32.xlu0 %v1119, 64
    %v1165 = vpop.permute.xlu0 %1164
    %1166 = vrot.lane.b32.xlu0 %v1123, 64
    %v1167 = vpop.permute.xlu0 %1166
    %v1170 = vadd.f32 %v1042, %v1165
    %v1171 = vadd.f32 %v1043, %v1167
    %v1172 = vtanh.pop %v1170
    %v1173 = vtanh.pop %v1171
    %v1174 = vmul.f32 %v1137, %v1172
    %v1175 = vmul.f32 %v1139, %v1173
    %v1176 = vadd.f32 %v1162, %v1174
    %v1177 = vadd.f32 %v1163, %v1175
    %1178 = vrot.lane.b32.xlu0 %v1119, 32
    %v1179 = vpop.permute.xlu0 %1178
    %1180 = vrot.lane.b32.xlu0 %v1123, 32
    %v1181 = vpop.permute.xlu0 %1180
    %v1184 = vadd.f32 %v1044, %v1179
    %v1185 = vadd.f32 %v1045, %v1181
    %v1186 = vxor.u32 %v1184, 2147483648
    %v1187 = vxor.u32 %v1185, 2147483648
    %v1188 = vmul.f32 %v1186, 1.442695
    %v1189 = vpow.pop %v1188
    %v1190 = vmul.f32 %v1187, 1.442695
    %v1191 = vpow.pop %v1190
    %v1192 = vadd.f32 %v1189, 1.0
    %v1193 = vadd.f32 %v1191, 1.0
    %v1194 = vrcp.pop %v1192
    %v1195 = vmul.f32 1.0, %v1194
    %v1196 = vrcp.pop %v1193
    %v1197 = vmul.f32 1.0, %v1196
    %v1198 = vtanh.pop %v1176
    %v1199 = vtanh.pop %v1177
    %v1200 = vmul.f32 %v1195, %v1198
    %v1201 = vmul.f32 %v1197, %v1199
    %1202 = vst.msk [vmem:[#allocation4 + $0x6] sm:$0x1] %vm204, %v1200
    %1203 = vst.msk [vmem:[#allocation4 + $0xe] sm:$0x1] %vm204, %v1201
    %1204 = vst.msk [vmem:[#allocation6 + $0x6] sm:$0x1] %vm204, %v1176
    %1205 = vst.msk [vmem:[#allocation6 + $0xe] sm:$0x1] %vm204, %v1177
    %v1206 = vld [vmem:[%s0 + $0x7] sm:$0x1]
    %v1207 = vld [vmem:[%s0 + $0xf] sm:$0x1]
    %v1208 = vld [vmem:[%s40 + $0x7] sm:$0x1]
    %v1209 = vld [vmem:[%s40 + $0xf] sm:$0x1]
    %v1210 = vld [vmem:[%s43 + $0x7] sm:$0x1]
    %v1211 = vld [vmem:[%s43 + $0xf] sm:$0x1]
    %v1214 = vrot.slane %v1201, 7
    %v1215 = vsel %vm218, %v1214, %v1200
    %v1216 = vsel %vm46, %v1215, 0
    %1218 = vmatprep.subr.mxu0 0.0
    %1219 = vmatpush1.msra.mxu0 %v25
    %1220 = vmatprep.subr.mxu0 0.0
    %1221 = vmatpush1.msra.mxu0 %v26
    %1222 = vmatprep.subr.mxu0 0.0
    %1223 = vmatpush1.msra.mxu0 %v27
    %1224 = vmatprep.subr.mxu0 0.0
    %1225 = vmatpush1.msra.mxu0 %v28
    %1226 = vmatprep.subr.mxu0 0.0
    %1227 = vmatpush1.msra.mxu0 0.0
    %1228 = vmatprep.subr.mxu0 0.0
    %1229 = vmatpush1.msra.mxu0 0.0
    %1230 = vmatprep.subr.mxu0 0.0
    %1231 = vmatpush1.msra.mxu0 0.0
    %1232 = vmatprep.subr.mxu0 0.0
    %1233 = vmatpush1.msra.mxu0 0.0
    %1234 = vmatprep.subr.mxu0 0.0
    %1235 = vmatpush1.msra.mxu0 0.0
    %1236 = vmatprep.subr.mxu0 0.0
    %1237 = vmatpush1.msra.mxu0 0.0
    %1238 = vmatprep.subr.mxu0 0.0
    %1239 = vmatpush1.msra.mxu0 0.0
    %1240 = vmatprep.subr.mxu0 0.0
    %1241 = vmatpush1.msra.mxu0 0.0
    %1242 = vmatprep.subr.mxu0 0.0
    %1243 = vmatpush1.msra.mxu0 0.0
    %1244 = vmatprep.subr.mxu0 0.0
    %1245 = vmatpush1.msra.mxu0 0.0
    %1246 = vmatprep.subr.mxu0 0.0
    %1247 = vmatpush1.msra.mxu0 0.0
    %1248 = vmatprep.subr.mxu0 0.0
    %1249 = vmatpush1.msra.mxu0 0.0
    %1250 = vmatprep.subr.mxu0 0.0
    %1251 = vmatpush1.msra.mxu0 0.0
    %1252 = vmatprep.subr.mxu0 0.0
    %1253 = vmatpush1.msra.mxu0 0.0
    %1254 = vmatprep.subr.mxu0 0.0
    %1255 = vmatpush1.msra.mxu0 0.0
    %1256 = vmatprep.subr.mxu0 0.0
    %1257 = vmatpush1.msra.mxu0 0.0
    %1258 = vmatprep.subr.mxu0 0.0
    %1259 = vmatpush1.msra.mxu0 0.0
    %1260 = vmatprep.subr.mxu0 0.0
    %1261 = vmatpush1.msra.mxu0 0.0
    %1262 = vmatprep.subr.mxu0 0.0
    %1263 = vmatpush1.msra.mxu0 0.0
    %1264 = vmatprep.subr.mxu0 0.0
    %1265 = vmatpush1.msra.mxu0 0.0
    %1266 = vmatprep.subr.mxu0 0.0
    %1267 = vmatpush1.msra.mxu0 0.0
    %1268 = vmatprep.subr.mxu0 0.0
    %1269 = vmatpush1.msra.mxu0 0.0
    %1270 = vmatprep.subr.mxu0 0.0
    %1271 = vmatpush1.msra.mxu0 0.0
    %1272 = vmatprep.subr.mxu0 0.0
    %1273 = vmatpush1.msra.mxu0 0.0
    %1274 = vmatprep.subr.mxu0 0.0
    %1275 = vmatpush1.msra.mxu0 0.0
    %1276 = vmatprep.subr.mxu0 0.0
    %1277 = vmatpush1.msra.mxu0 0.0
    %1278 = vmatprep.subr.mxu0 0.0
    %1279 = vmatpush1.msra.mxu0 0.0
    %1280 = vmatprep.subr.mxu0 0.0
    %1281 = vmatpush1.msra.mxu0 0.0
    %1282 = vmatprep.mubr.f32.mxu0 0.0
    %1283 = vmatmul.mubr.f32.gmra.mrb[0].mxu0 %v1216
    %v1284 = vpop.f32.mrb[0].mxu0
    %v1285 = vadd.f32 0.0, %v1284
    %v1286 = vpop.f32.mrb[0].mxu0
    %1287 = vdwg.mxu0
    %v1289 = vrot.slane %v1285, 1
    %v1292 = vadd.f32 %v1206, %v1285
    %v1293 = vadd.f32 %v1207, %v1289
    %v1294 = vxor.u32 %v1292, 2147483648
    %v1295 = vxor.u32 %v1293, 2147483648
    %v1296 = vmul.f32 %v1294, 1.442695
    %v1297 = vpow.pop %v1296
    %v1298 = vmul.f32 %v1295, 1.442695
    %v1299 = vpow.pop %v1298
    %v1300 = vadd.f32 %v1297, 1.0
    %v1301 = vadd.f32 %v1299, 1.0
    %v1302 = vrcp.pop %v1300
    %v1303 = vmul.f32 1.0, %v1302
    %v1304 = vrcp.pop %v1301
    %v1305 = vmul.f32 1.0, %v1304
    %1306 = vrot.lane.b32.xlu0 %v1285, 96
    %v1307 = vpop.permute.xlu0 %1306
    %1308 = vrot.lane.b32.xlu0 %v1289, 96
    %v1309 = vpop.permute.xlu0 %1308
    %v1312 = vadd.f32 %v1206, %v1307
    %v1313 = vadd.f32 %v1207, %v1309
    %v1314 = vadd.f32 %v1312, %v34
    %v1315 = vadd.f32 %v1313, %v34
    %v1316 = vxor.u32 %v1314, 2147483648
    %v1317 = vxor.u32 %v1315, 2147483648
    %v1318 = vmul.f32 %v1316, 1.442695
    %v1319 = vpow.pop %v1318
    %v1320 = vmul.f32 %v1317, 1.442695
    %v1321 = vpow.pop %v1320
    %v1322 = vadd.f32 %v1319, 1.0
    %v1323 = vadd.f32 %v1321, 1.0
    %v1324 = vrcp.pop %v1322
    %v1325 = vmul.f32 1.0, %v1324
    %v1326 = vrcp.pop %v1323
    %v1327 = vmul.f32 1.0, %v1326
    %v1328 = vmul.f32 %v1325, %v1176
    %v1329 = vmul.f32 %v1327, %v1177
    %1330 = vrot.lane.b32.xlu0 %v1285, 64
    %v1331 = vpop.permute.xlu0 %1330
    %1332 = vrot.lane.b32.xlu0 %v1289, 64
    %v1333 = vpop.permute.xlu0 %1332
    %v1336 = vadd.f32 %v1208, %v1331
    %v1337 = vadd.f32 %v1209, %v1333
    %v1338 = vtanh.pop %v1336
    %v1339 = vtanh.pop %v1337
    %v1340 = vmul.f32 %v1303, %v1338
    %v1341 = vmul.f32 %v1305, %v1339
    %v1342 = vadd.f32 %v1328, %v1340
    %v1343 = vadd.f32 %v1329, %v1341
    %1344 = vrot.lane.b32.xlu0 %v1285, 32
    %v1345 = vpop.permute.xlu0 %1344
    %1346 = vrot.lane.b32.xlu0 %v1289, 32
    %v1347 = vpop.permute.xlu0 %1346
    %v1350 = vadd.f32 %v1210, %v1345
    %v1351 = vadd.f32 %v1211, %v1347
    %v1352 = vxor.u32 %v1350, 2147483648
    %v1353 = vxor.u32 %v1351, 2147483648
    %v1354 = vmul.f32 %v1352, 1.442695
    %v1355 = vpow.pop %v1354
    %v1356 = vmul.f32 %v1353, 1.442695
    %v1357 = vpow.pop %v1356
    %v1358 = vadd.f32 %v1355, 1.0
    %v1359 = vadd.f32 %v1357, 1.0
    %v1360 = vrcp.pop %v1358
    %v1361 = vmul.f32 1.0, %v1360
    %v1362 = vrcp.pop %v1359
    %v1363 = vmul.f32 1.0, %v1362
    %v1364 = vtanh.pop %v1342
    %v1365 = vtanh.pop %v1343
    %v1366 = vmul.f32 %v1361, %v1364
    %v1367 = vmul.f32 %v1363, %v1365
    %1368 = vst.msk [vmem:[#allocation4 + $0x7] sm:$0x1] %vm204, %v1366
    %1369 = vst.msk [vmem:[#allocation4 + $0xf] sm:$0x1] %vm204, %v1367
    %1370 = vst.msk [vmem:[#allocation6 + $0x7] sm:$0x1] %vm204, %v1342
    %1371 = vst.msk [vmem:[#allocation6 + $0xf] sm:$0x1] %vm204, %v1343
    %v1374 = vrot.slane %v1367, 7
    %v1375 = vsel %vm218, %v1374, %v1366
    %vm1377 = vcmask 254976
    %1378 = vst.msk [vmem:[#allocation2] sm:$0x3] %vm1377, %v1375
    %v1381 = vrot.slane %v1343, 7
    %v1382 = vsel %vm218, %v1381, %v1342
    %1384 = vst.msk [vmem:[#allocation3] sm:$0x3] %vm1377, %v1382
    // Predicated region
    $region18: #{lstm_forward.3} parent=1 // pred_check
      _
    $region19: #{lstm_forward.3} parent=1 // pred_check_branch
      %1386 = sbr.rel (0) target = $region21
    $region20: #{lstm_forward.3} parent=1 // pred_region
      %s1388 = ssub.s32 256, 256
      %1389 = vsyncadd [#allocation5], %s1388
      %s1390 = sshll.u32 [#allocation4], 4
      %s1391 = int_to_ptr.vmem [resolvable:$true] %s1390
      %1396 = dma.vmem_to_hbm [thread:$0]  %s1391, 256, %s3, [#allocation5], 128, 128, 8
    $region21: #{lstm_forward.3} parent=1 // pred_fallthru
      _
    // Predicated region
    $region22: #{lstm_forward.3} parent=1 // pred_check
      _
    $region23: #{lstm_forward.3} parent=1 // pred_check_branch
      %1398 = sbr.rel (0) target = $region25
    $region24: #{lstm_forward.3} parent=1 // pred_region
      %s1400 = ssub.s32 256, 256
      %1401 = vsyncadd [#allocation7], %s1400
      %s1402 = sshll.u32 [#allocation6], 4
      %s1403 = int_to_ptr.vmem [resolvable:$true] %s1402
      %1408 = dma.vmem_to_hbm [thread:$0]  %s1403, 256, %s4, [#allocation7], 128, 128, 8
    $region25: #{lstm_forward.3} parent=1 // pred_fallthru
      _
    // Predicated region
    $region26: #{lstm_forward.3} parent=1 // pred_check
      _
    $region27: #{lstm_forward.3} parent=1 // pred_check_branch
      %1410 = sbr.rel (0) target = $region29
    $region28: #{lstm_forward.3} parent=1 // pred_region
      %1411 = dma.done [#allocation5], 256
    $region29: #{lstm_forward.3} parent=1 // pred_fallthru
      _
    // Predicated region
    $region30: #{lstm_forward.3} parent=1 // pred_check
      _
    $region31: #{lstm_forward.3} parent=1 // pred_check_branch
      %1413 = sbr.rel (0) target = $region33
    $region32: #{lstm_forward.3} parent=1 // pred_region
      %1414 = dma.done [#allocation7], 256
    $region33: #{lstm_forward.3} parent=1 // pred_fallthru
      _
    %1415 = vsyncpa [#allocation5], 1
    %1416 = vsyncpa [#allocation7], 1

</llo_original>
